<compile_context>
chip_gen: v7x
topology: tpu7x:2x2x1
jax: 0.10.0
libtpu: 0.0.40
codegen_flags: <defaults>
</compile_context>

<pallas_src>
import jax
import jax.numpy as jnp
from jax.experimental import pallas as pl
from jax.experimental.pallas import tpu as pltpu


def _round_up(x, m):
    return -(-x // m) * m


def _choose_tiling(n_rows, l1p, d, dout, v):
    """Pick the row block (bn) from a VMEM budget and a matching vmem limit."""
    try:
        cap = getattr(pltpu.get_tpu_info(), "vmem_capacity_bytes", 64 * 1024 * 1024)
    except Exception:
        cap = 64 * 1024 * 1024                       # v7x-safe fallback
    vmem_limit = min(int(cap * 0.75), 100 * 1024 * 1024)
    budget = int(vmem_limit * 0.6)

    # grid-invariant (double-buffered) residents: pos, keys, values, proj_w, etc.
    resident = 2 * (l1p * d * 2 + 2 * v * d * 2 + d * dout * 2 + 6 * d * 4 + dout * 4)
    # per-row cost: bf16 tok block (x2 buffers) + f32 x/z intermediates + misc.
    per_row = (2 * l1p * d * 2 + 2 * l1p * d * 4 + 2 * d * 2 + 2 * dout * 4
               + 4 * d * 4 + 2 * 1024)

    bn = 1024
    while bn > 8 and resident + bn * per_row > budget:
        bn //= 2
    # keep >=2 grid steps so the "parallel" row axis can shard across TensorCores
    while bn > 8 and bn >= n_rows and n_rows > 8:
        bn //= 2
    bn = min(max(bn, 8), _round_up(max(n_rows, 8), 8))
    return bn, vmem_limit


# ----------------------------------------------------------------------------
# Fused kernel, per row tile of N = B*(T+1) sequences:
#   hist_tok = softmax(slot0 @ (10*keys)^T) @ values + mode_emb      (slot-0 token)
#   x        = [hist_tok ; word embeds] + pos                         (f32)
#   z        = LayerNorm(x) * gamma + beta        (dropout = identity, eval)
#   [TODO(synk): pretrained flan-t5 encoder stack (self.lm[0]) would run here;
#    it is an external checkpointed transformer and is treated as identity.]
#   sent     = sum_l(mask * z) / max(end-start, 1e-9)                 (mean pool)
#   sent     = sent * rsqrt(max(|sent|^2, 1e-12))                     (L2 norm)
#   out      = sent @ proj_w + proj_b
# ----------------------------------------------------------------------------
def _fused_kernel(slot0_ref, tok_ref, pos_ref, idx_ref, start_ref, end_ref,
                  keys_ref, vals_ref, mode_ref, g_ref, b_ref, w_ref, pb_ref,
                  o_ref):
    # --- hist-mode attention for the slot-0 token (keys pre-scaled by 10) ---
    h = slot0_ref[...]                                            # (bn, D) bf16
    scores = jax.lax.dot_general(
        h, keys_ref[...], (((1,), (1,)), ((), ())),
        preferred_element_type=jnp.float32)                       # (bn, V) f32
    m = jnp.max(scores, axis=-1, keepdims=True)
    e = jnp.exp(scores - m)
    p = e * pl.reciprocal(jnp.sum(e, axis=-1, keepdims=True), approx=True)
    hist_tok = jnp.dot(p.astype(jnp.bfloat16), vals_ref[...],
                       preferred_element_type=jnp.float32)        # (bn, D) f32
    hist_tok = hist_tok + mode_ref[...]

    # --- assemble x = [hist_tok ; word embeds] + pos, all in f32 ------------
    idx = idx_ref[...]                                            # (1, L1p, 1) i32
    x = jnp.where(idx == 0, hist_tok[:, None, :],
                  tok_ref[...].astype(jnp.float32))               # (bn, L1p, D)
    x = x + pos_ref[...].astype(jnp.float32)

    # --- LayerNorm (eval mode: dropout = identity) ---------------------------
    mu = jnp.mean(x, axis=-1, keepdims=True)
    xc = x - mu
    var = jnp.mean(xc * xc, axis=-1, keepdims=True)
    z = xc * jax.lax.rsqrt(var + 1e-5) * g_ref[...] + b_ref[...]

    # --- masked mean pooling (prefix mask rebuilt from [start, end)) ---------
    start = start_ref[...][:, :, None]                            # (bn, 1, 1)
    end = end_ref[...][:, :, None]                                # (bn, 1, 1)
    mask = ((idx >= start) & (idx < end)).astype(jnp.float32)     # (bn, L1p, 1)
    s = jnp.sum(z * mask, axis=1)                                 # (bn, D)
    cnt = (end_ref[...] - start_ref[...]).astype(jnp.float32)     # (bn, 1)
    sent = s * pl.reciprocal(jnp.maximum(cnt, 1e-9), approx=True)

    # --- L2 normalize + projection -------------------------------------------
    ss = jnp.sum(sent * sent, axis=-1, keepdims=True)
    sent = sent * jax.lax.rsqrt(jnp.maximum(ss, 1e-12))           # eps: no NaN rows
    out = jnp.dot(sent.astype(jnp.bfloat16), w_ref[...],
                  preferred_element_type=jnp.float32) + pb_ref[...]
    o_ref[...] = out                                              # (bn, Dout) f32


def fused_embed_pool_proj(slot0, tok_emb, pos, start, end, keys10, values,
                          mode_emb, gamma, beta, proj_w, proj_b):
    N, L1p, D = tok_emb.shape
    V = keys10.shape[0]
    Dout = proj_w.shape[1]
    bn, vmem_limit = _choose_tiling(N, L1p, D, Dout, V)
    grid = (pl.cdiv(N, bn),)
    posidx = jnp.arange(L1p, dtype=jnp.int32).reshape(1, L1p, 1)

    return pl.pallas_call(
        _fused_kernel,
        out_shape=jax.ShapeDtypeStruct((N, Dout), jnp.float32),
        grid=grid,
        in_specs=[
            pl.BlockSpec((bn, D), lambda i: (i, 0)),            # slot0 (bf16)
            pl.BlockSpec((bn, L1p, D), lambda i: (i, 0, 0)),    # token embeds (bf16)
            pl.BlockSpec((1, L1p, D), lambda i: (0, 0, 0)),     # pos embeds (bf16)
            pl.BlockSpec((1, L1p, 1), lambda i: (0, 0, 0)),     # position index (i32)
            pl.BlockSpec((bn, 1), lambda i: (i, 0)),            # mask start (i32)
            pl.BlockSpec((bn, 1), lambda i: (i, 0)),            # mask end (i32)
            pl.BlockSpec((V, D), lambda i: (0, 0)),             # 10 * hist_keys (bf16)
            pl.BlockSpec((V, D), lambda i: (0, 0)),             # hist_values (bf16)
            pl.BlockSpec((1, D), lambda i: (0, 0)),             # hist_mode_emb (f32)
            pl.BlockSpec((1, 1, D), lambda i: (0, 0, 0)),       # LN gamma (f32)
            pl.BlockSpec((1, 1, D), lambda i: (0, 0, 0)),       # LN beta (f32)
            pl.BlockSpec((D, Dout), lambda i: (0, 0)),          # proj_w (bf16)
            pl.BlockSpec((1, Dout), lambda i: (0, 0)),          # proj_b (f32)
        ],
        out_specs=pl.BlockSpec((bn, Dout), lambda i: (i, 0)),
        compiler_params=pltpu.CompilerParams(
            dimension_semantics=("parallel",),
            vmem_limit_bytes=vmem_limit),
    )(slot0, tok_emb, pos, posidx, start, end, keys10, values, mode_emb,
      gamma, beta, proj_w, proj_b)


# ----------------------------------------------------------------------------
# Full forward (eval mode: dropout = identity)
# ----------------------------------------------------------------------------
@jax.jit
def nlq_model5_forward(params, hists, input_ids, attention_mask, durations,
                       gt_segments):
    # TODO(synk): T5 tokenizer is an external text preprocessor; token ids /
    # attention masks are supplied directly (padding='max_length' => the mask
    # is a right-padded prefix run, which is what the [start, end) encoding
    # below assumes).
    B, T, D = hists.shape
    N, L = input_ids.shape                       # N = B * (T + 1)
    L1 = L + 1
    L1p = _round_up(L1, 16)                      # bf16 sublane packing

    # --- word-embedding gather stays in XLA, directly into the padded layout.
    # TODO(synk): this gather could be moved in-kernel (scalar-prefetched ids +
    # manual DMA from an HBM-resident table) to also remove this single bf16
    # write; kept in XLA since per-token DMAs are descriptor-overhead bound.
    word_emb = params["word_emb"]                                 # (vocab, D) bf16
    ids_p = jnp.zeros((N, L1p), jnp.int32).at[:, 1:L1].set(input_ids)
    tok_emb = word_emb[ids_p]                                     # (N, L1p, D) bf16

    pos = jnp.zeros((L1p, D), params["pos_emb"].dtype)
    pos = pos.at[:L1].set(params["pos_emb"][:L1]).reshape(1, L1p, D)   # bf16

    # slot-0 inputs: hists for caption rows, zeros for the query row.  The
    # query row's slot-0 value is masked out of the pooling (and the whole
    # query row is dropped below), so it never affects the returned features.
    slot0 = jnp.concatenate([hists, jnp.zeros((B, 1, D), hists.dtype)], axis=1)
    slot0 = slot0.reshape(N, D).astype(jnp.bfloat16)

    # prefix-mask bookkeeping: valid positions are [start, end) in [hist|tokens]
    lens = jnp.sum(attention_mask.astype(jnp.int32), axis=1)      # (N,)
    is_query = (jnp.arange(N, dtype=jnp.int32) % (T + 1)) == T
    start = jnp.where(is_query, 1, 0).astype(jnp.int32).reshape(N, 1)
    end = (lens + 1).astype(jnp.int32).reshape(N, 1)

    keys10 = (10.0 * params["hist_keys"]).astype(jnp.bfloat16)    # fold the scale
    values = params["hist_values"].astype(jnp.bfloat16)
    mode = params["hist_mode_emb"].reshape(1, D).astype(jnp.float32)
    gamma = params["ln_gamma"].reshape(1, 1, D)
    beta = params["ln_beta"].reshape(1, 1, D)
    w = params["proj_w"].astype(jnp.bfloat16)
    pb = params["proj_b"].reshape(1, -1)

    proj_all = fused_embed_pool_proj(slot0, tok_emb, pos, start, end, keys10,
                                     values, mode, gamma, beta, w, pb)  # (N, D)

    proj = proj_all.reshape(B, T + 1, -1)[:, :-1]                 # drop query slot
    gt_segments = gt_segments.astype(durations.dtype)             # type_as(durations)

    feat = jnp.transpose(proj, (0, 2, 1))                         # 'b t d -> b d t'
    # TODO(synk): NLQHead (localization head) is not defined in the module;
    # its input features are returned instead of nlq_results.
    return feat


# ----------------------------------------------------------------------------
# Deterministic parameter construction + example run
# ----------------------------------------------------------------------------
def make_params(key, vocab, max_pos, d_model, n_hist_modes):
    ks = jax.random.split(key, 8)
    scale = 0.02
    return {
        # MXU / streaming operands stored in bf16 (f32 accumulation in-kernel)
        "word_emb": (scale * jax.random.normal(ks[0], (vocab, d_model))).astype(jnp.bfloat16),
        "pos_emb": (scale * jax.random.normal(ks[1], (max_pos, d_model))).astype(jnp.bfloat16),
        "hist_keys": (scale * jax.random.normal(ks[2], (n_hist_modes, d_model))).astype(jnp.bfloat16),
        "hist_values": (scale * jax.random.normal(ks[3], (n_hist_modes, d_model))).astype(jnp.bfloat16),
        "proj_w": (scale * jax.random.normal(ks[5], (d_model, d_model))).astype(jnp.bfloat16),
        # small / precision-sensitive params stay f32
        "ln_gamma": jnp.ones((d_model,), jnp.float32),
        "ln_beta": jnp.zeros((d_model,), jnp.float32),
        "hist_mode_emb": scale * jax.random.normal(ks[4], (d_model,), jnp.float32),
        "proj_b": jnp.zeros((d_model,), jnp.float32),
    }


if __name__ == "__main__":
    # Small demo shapes; D = 128 so every store is lane-dense.
    B, T, L, D = 2, 4, 8, 128           # batch, captions per video, seq len, d_model
    V_HIST, VOCAB, MAX_POS = 16, 64, 32
    N = B * (T + 1)

    root = jax.random.PRNGKey(0)
    k_par, k_h, k_ids, k_len, k_dur, k_seg = jax.random.split(root, 6)

    params = make_params(k_par, VOCAB, MAX_POS, D, V_HIST)

    hists = jax.random.normal(k_h, (B, T, D), jnp.float32)
    input_ids = jax.random.randint(k_ids, (N, L), 1, VOCAB, dtype=jnp.int32)
    # tokenizer(padding='max_length') => right-padded prefix attention masks
    lens = jax.random.randint(k_len, (N,), 1, L + 1, dtype=jnp.int32)
    attention_mask = (jnp.arange(L)[None, :] < lens[:, None]).astype(jnp.float32)
    durations = 100.0 * jax.random.uniform(k_dur, (B,), jnp.float32)
    gt_segments = jax.random.uniform(k_seg, (B, 1, 2), jnp.float32)

    feat = nlq_model5_forward(params, hists, input_ids, attention_mask,
                              durations, gt_segments)
    jax.block_until_ready(feat)
    assert feat.shape == (B, D, T)
    assert bool(jnp.all(jnp.isfinite(feat)))
    print("KERNEL_OK")
</pallas_src>

<mosaic_0001>
module attributes {stable_mosaic.version = 11 : i64} {
  func.func @_fused_kernel(%arg0: i32, %arg1: memref<8x128xbf16, #tpu.memory_space<vmem>>, %arg2: memref<8x16x128xbf16, #tpu.memory_space<vmem>>, %arg3: memref<1x16x128xbf16, #tpu.memory_space<vmem>>, %arg4: memref<1x16x1xi32, #tpu.memory_space<vmem>>, %arg5: memref<8x1xi32, #tpu.memory_space<vmem>>, %arg6: memref<8x1xi32, #tpu.memory_space<vmem>>, %arg7: memref<16x128xbf16, #tpu.memory_space<vmem>>, %arg8: memref<16x128xbf16, #tpu.memory_space<vmem>>, %arg9: memref<1x128xf32, #tpu.memory_space<vmem>>, %arg10: memref<1x1x128xf32, #tpu.memory_space<vmem>>, %arg11: memref<1x1x128xf32, #tpu.memory_space<vmem>>, %arg12: memref<128x128xbf16, #tpu.memory_space<vmem>>, %arg13: memref<1x128xf32, #tpu.memory_space<vmem>>, %arg14: memref<8x128xf32, #tpu.memory_space<vmem>>) attributes {dimension_semantics = [#tpu.dimension_semantics<parallel>], iteration_bounds = array<i64: 2>, scalar_prefetch = 0 : i64, scratch_operands = 0 : i64, tpu.core_type = #tpu.core_type<tc>, window_params = [{transform_indices = @transform_0, window_bounds = array<i64: 8, 128>}, {transform_indices = @transform_1, window_bounds = array<i64: 8, 16, 128>}, {pipeline_mode = #tpu.pipeline_mode<synchronous>, transform_indices = @transform_2, window_bounds = array<i64: 1, 16, 128>}, {pipeline_mode = #tpu.pipeline_mode<synchronous>, transform_indices = @transform_3, window_bounds = array<i64: 1, 16, 1>}, {transform_indices = @transform_4, window_bounds = array<i64: 8, 1>}, {transform_indices = @transform_5, window_bounds = array<i64: 8, 1>}, {pipeline_mode = #tpu.pipeline_mode<synchronous>, transform_indices = @transform_6, window_bounds = array<i64: 16, 128>}, {pipeline_mode = #tpu.pipeline_mode<synchronous>, transform_indices = @transform_7, window_bounds = array<i64: 16, 128>}, {pipeline_mode = #tpu.pipeline_mode<synchronous>, transform_indices = @transform_8, window_bounds = array<i64: 1, 128>}, {pipeline_mode = #tpu.pipeline_mode<synchronous>, transform_indices = @transform_9, window_bounds = array<i64: 1, 1, 128>}, {pipeline_mode = #tpu.pipeline_mode<synchronous>, transform_indices = @transform_10, window_bounds = array<i64: 1, 1, 128>}, {pipeline_mode = #tpu.pipeline_mode<synchronous>, transform_indices = @transform_11, window_bounds = array<i64: 128, 128>}, {pipeline_mode = #tpu.pipeline_mode<synchronous>, transform_indices = @transform_12, window_bounds = array<i64: 1, 128>}, {transform_indices = @transform_13, window_bounds = array<i64: 8, 128>}]} {
    %c0 = arith.constant 0 : index
    %c0_0 = arith.constant 0 : index
    %0 = vector.load %arg1[%c0, %c0_0] : memref<8x128xbf16, #tpu.memory_space<vmem>>, vector<8x128xbf16>
    %c0_1 = arith.constant 0 : index
    %c0_2 = arith.constant 0 : index
    %1 = vector.load %arg7[%c0_1, %c0_2] : memref<16x128xbf16, #tpu.memory_space<vmem>>, vector<16x128xbf16>
    %cst = arith.constant dense<0.000000e+00> : vector<8x16xf32>
    %2 = tpu.matmul %0, %1, %cst {dimension_numbers = #tpu.dot_dimension_numbers<[1], [1], [0], [0], [0, 0, 1, 0], [], []>} : vector<8x128xbf16>, vector<16x128xbf16>, vector<8x16xf32> -> vector<8x16xf32>
    %cst_3 = arith.constant dense<0xFF800000> : vector<8xf32>
    %3 = vector.multi_reduction <maximumf>, %2, %cst_3 [1] : vector<8x16xf32> to vector<8xf32>
    %4 = vector.shape_cast %3 : vector<8xf32> to vector<8x1xf32>
    %5 = vector.broadcast %4 : vector<8x1xf32> to vector<8x16xf32>
    %6 = arith.subf %2, %5 : vector<8x16xf32>
    %7 = math.exp %6 : vector<8x16xf32>
    %cst_4 = arith.constant dense<0.000000e+00> : vector<8xf32>
    %8 = vector.multi_reduction <add>, %7, %cst_4 [1] : vector<8x16xf32> to vector<8xf32>
    %9 = vector.shape_cast %8 : vector<8xf32> to vector<8x1xf32>
    %10 = tpu.reciprocal %9 {approx = true} : vector<8x1xf32> -> vector<8x1xf32>
    %11 = vector.broadcast %10 : vector<8x1xf32> to vector<8x16xf32>
    %12 = arith.mulf %7, %11 : vector<8x16xf32>
    %13 = arith.truncf %12 : vector<8x16xf32> to vector<8x16xbf16>
    %c0_5 = arith.constant 0 : index
    %c0_6 = arith.constant 0 : index
    %14 = vector.load %arg8[%c0_5, %c0_6] : memref<16x128xbf16, #tpu.memory_space<vmem>>, vector<16x128xbf16>
    %cst_7 = arith.constant dense<0.000000e+00> : vector<8x128xf32>
    %15 = tpu.matmul %13, %14, %cst_7 {dimension_numbers = #tpu.dot_dimension_numbers<[1], [0], [0], [1], [0, 0, 1, 1], [], []>} : vector<8x16xbf16>, vector<16x128xbf16>, vector<8x128xf32> -> vector<8x128xf32>
    %c0_8 = arith.constant 0 : index
    %c0_9 = arith.constant 0 : index
    %16 = vector.load %arg9[%c0_8, %c0_9] : memref<1x128xf32, #tpu.memory_space<vmem>>, vector<1x128xf32>
    %17 = vector.broadcast %16 : vector<1x128xf32> to vector<8x128xf32>
    %18 = arith.addf %15, %17 : vector<8x128xf32>
    %c0_10 = arith.constant 0 : index
    %c0_11 = arith.constant 0 : index
    %c0_12 = arith.constant 0 : index
    %19 = vector.load %arg4[%c0_10, %c0_11, %c0_12] : memref<1x16x1xi32, #tpu.memory_space<vmem>>, vector<1x16x1xi32>
    %c0_i32 = arith.constant 0 : i32
    %20 = vector.broadcast %c0_i32 : i32 to vector<1x16x1xi32>
    %21 = arith.cmpi eq, %19, %20 : vector<1x16x1xi32>
    %22 = vector.shape_cast %18 : vector<8x128xf32> to vector<8x1x128xf32>
    %c0_13 = arith.constant 0 : index
    %c0_14 = arith.constant 0 : index
    %c0_15 = arith.constant 0 : index
    %23 = vector.load %arg2[%c0_13, %c0_14, %c0_15] : memref<8x16x128xbf16, #tpu.memory_space<vmem>>, vector<8x16x128xbf16>
    %24 = arith.extf %23 : vector<8x16x128xbf16> to vector<8x16x128xf32>
    %25 = vector.shape_cast %21 : vector<1x16x1xi1> to vector<1x16x1xi1>
    %26 = vector.broadcast %25 : vector<1x16x1xi1> to vector<8x16x128xi1>
    %27 = vector.shape_cast %22 : vector<8x1x128xf32> to vector<8x1x128xf32>
    %28 = vector.broadcast %27 : vector<8x1x128xf32> to vector<8x16x128xf32>
    %29 = arith.select %26, %28, %24 : vector<8x16x128xi1>, vector<8x16x128xf32>
    %c0_16 = arith.constant 0 : index
    %c0_17 = arith.constant 0 : index
    %c0_18 = arith.constant 0 : index
    %30 = vector.load %arg3[%c0_16, %c0_17, %c0_18] : memref<1x16x128xbf16, #tpu.memory_space<vmem>>, vector<1x16x128xbf16>
    %31 = arith.extf %30 : vector<1x16x128xbf16> to vector<1x16x128xf32>
    %32 = vector.broadcast %31 : vector<1x16x128xf32> to vector<8x16x128xf32>
    %33 = arith.addf %29, %32 : vector<8x16x128xf32>
    %cst_19 = arith.constant dense<0.000000e+00> : vector<8x16xf32>
    %34 = vector.multi_reduction <add>, %33, %cst_19 [2] : vector<8x16x128xf32> to vector<8x16xf32>
    %35 = vector.shape_cast %34 : vector<8x16xf32> to vector<8x16x1xf32>
    %cst_20 = arith.constant 1.280000e+02 : f32
    %36 = vector.broadcast %cst_20 : f32 to vector<8x16x1xf32>
    %37 = arith.divf %35, %36 : vector<8x16x1xf32>
    %38 = vector.broadcast %37 : vector<8x16x1xf32> to vector<8x16x128xf32>
    %39 = arith.subf %33, %38 : vector<8x16x128xf32>
    %40 = arith.mulf %39, %39 : vector<8x16x128xf32>
    %cst_21 = arith.constant dense<0.000000e+00> : vector<8x16xf32>
    %41 = vector.multi_reduction <add>, %40, %cst_21 [2] : vector<8x16x128xf32> to vector<8x16xf32>
    %42 = vector.shape_cast %41 : vector<8x16xf32> to vector<8x16x1xf32>
    %cst_22 = arith.constant 1.280000e+02 : f32
    %43 = vector.broadcast %cst_22 : f32 to vector<8x16x1xf32>
    %44 = arith.divf %42, %43 : vector<8x16x1xf32>
    %cst_23 = arith.constant 9.99999974E-6 : f32
    %45 = vector.broadcast %cst_23 : f32 to vector<8x16x1xf32>
    %46 = arith.addf %44, %45 : vector<8x16x1xf32>
    %47 = math.rsqrt %46 : vector<8x16x1xf32>
    %48 = vector.broadcast %47 : vector<8x16x1xf32> to vector<8x16x128xf32>
    %49 = arith.mulf %39, %48 : vector<8x16x128xf32>
    %c0_24 = arith.constant 0 : index
    %c0_25 = arith.constant 0 : index
    %c0_26 = arith.constant 0 : index
    %50 = vector.load %arg10[%c0_24, %c0_25, %c0_26] : memref<1x1x128xf32, #tpu.memory_space<vmem>>, vector<1x1x128xf32>
    %51 = vector.broadcast %50 : vector<1x1x128xf32> to vector<8x16x128xf32>
    %52 = arith.mulf %49, %51 : vector<8x16x128xf32>
    %c0_27 = arith.constant 0 : index
    %c0_28 = arith.constant 0 : index
    %c0_29 = arith.constant 0 : index
    %53 = vector.load %arg11[%c0_27, %c0_28, %c0_29] : memref<1x1x128xf32, #tpu.memory_space<vmem>>, vector<1x1x128xf32>
    %54 = vector.broadcast %53 : vector<1x1x128xf32> to vector<8x16x128xf32>
    %55 = arith.addf %52, %54 : vector<8x16x128xf32>
    %c0_30 = arith.constant 0 : index
    %c0_31 = arith.constant 0 : index
    %56 = vector.load %arg5[%c0_30, %c0_31] : memref<8x1xi32, #tpu.memory_space<vmem>>, vector<8x1xi32>
    %57 = vector.shape_cast %56 : vector<8x1xi32> to vector<8x1x1xi32>
    %c0_32 = arith.constant 0 : index
    %c0_33 = arith.constant 0 : index
    %58 = vector.load %arg6[%c0_32, %c0_33] : memref<8x1xi32, #tpu.memory_space<vmem>>, vector<8x1xi32>
    %59 = vector.shape_cast %58 : vector<8x1xi32> to vector<8x1x1xi32>
    %60 = vector.broadcast %19 : vector<1x16x1xi32> to vector<8x16x1xi32>
    %61 = vector.broadcast %57 : vector<8x1x1xi32> to vector<8x16x1xi32>
    %62 = arith.cmpi sge, %60, %61 : vector<8x16x1xi32>
    %63 = vector.broadcast %19 : vector<1x16x1xi32> to vector<8x16x1xi32>
    %64 = vector.broadcast %59 : vector<8x1x1xi32> to vector<8x16x1xi32>
    %65 = arith.cmpi slt, %63, %64 : vector<8x16x1xi32>
    %66 = arith.andi %62, %65 : vector<8x16x1xi1>
    %67 = arith.extui %66 : vector<8x16x1xi1> to vector<8x16x1xi32>
    %68 = arith.sitofp %67 : vector<8x16x1xi32> to vector<8x16x1xf32>
    %69 = vector.broadcast %68 : vector<8x16x1xf32> to vector<8x16x128xf32>
    %70 = arith.mulf %55, %69 : vector<8x16x128xf32>
    %cst_34 = arith.constant dense<0.000000e+00> : vector<8x128xf32>
    %71 = vector.multi_reduction <add>, %70, %cst_34 [1] : vector<8x16x128xf32> to vector<8x128xf32>
    %c0_35 = arith.constant 0 : index
    %c0_36 = arith.constant 0 : index
    %72 = vector.load %arg6[%c0_35, %c0_36] : memref<8x1xi32, #tpu.memory_space<vmem>>, vector<8x1xi32>
    %c0_37 = arith.constant 0 : index
    %c0_38 = arith.constant 0 : index
    %73 = vector.load %arg5[%c0_37, %c0_38] : memref<8x1xi32, #tpu.memory_space<vmem>>, vector<8x1xi32>
    %74 = arith.subi %72, %73 : vector<8x1xi32>
    %75 = arith.sitofp %74 : vector<8x1xi32> to vector<8x1xf32>
    %cst_39 = arith.constant 9.99999971E-10 : f32
    %76 = vector.broadcast %cst_39 : f32 to vector<8x1xf32>
    %77 = arith.maximumf %75, %76 : vector<8x1xf32>
    %78 = tpu.reciprocal %77 {approx = true} : vector<8x1xf32> -> vector<8x1xf32>
    %79 = vector.broadcast %78 : vector<8x1xf32> to vector<8x128xf32>
    %80 = arith.mulf %71, %79 : vector<8x128xf32>
    %81 = arith.mulf %80, %80 : vector<8x128xf32>
    %cst_40 = arith.constant dense<0.000000e+00> : vector<8xf32>
    %82 = vector.multi_reduction <add>, %81, %cst_40 [1] : vector<8x128xf32> to vector<8xf32>
    %83 = vector.shape_cast %82 : vector<8xf32> to vector<8x1xf32>
    %cst_41 = arith.constant 9.99999996E-13 : f32
    %84 = vector.broadcast %cst_41 : f32 to vector<8x1xf32>
    %85 = arith.maximumf %83, %84 : vector<8x1xf32>
    %86 = math.rsqrt %85 : vector<8x1xf32>
    %87 = vector.broadcast %86 : vector<8x1xf32> to vector<8x128xf32>
    %88 = arith.mulf %80, %87 : vector<8x128xf32>
    %89 = arith.truncf %88 : vector<8x128xf32> to vector<8x128xbf16>
    %c0_42 = arith.constant 0 : index
    %c0_43 = arith.constant 0 : index
    %90 = vector.load %arg12[%c0_42, %c0_43] : memref<128x128xbf16, #tpu.memory_space<vmem>>, vector<128x128xbf16>
    %cst_44 = arith.constant dense<0.000000e+00> : vector<8x128xf32>
    %91 = tpu.matmul %89, %90, %cst_44 {dimension_numbers = #tpu.dot_dimension_numbers<[1], [0], [0], [1], [0, 0, 1, 1], [], []>} : vector<8x128xbf16>, vector<128x128xbf16>, vector<8x128xf32> -> vector<8x128xf32>
    %c0_45 = arith.constant 0 : index
    %c0_46 = arith.constant 0 : index
    %92 = vector.load %arg13[%c0_45, %c0_46] : memref<1x128xf32, #tpu.memory_space<vmem>>, vector<1x128xf32>
    %93 = vector.broadcast %92 : vector<1x128xf32> to vector<8x128xf32>
    %94 = arith.addf %91, %93 : vector<8x128xf32>
    %c0_47 = arith.constant 0 : index
    %c0_48 = arith.constant 0 : index
    %95 = vector.load %arg14[%c0_47, %c0_48] : memref<8x128xf32, #tpu.memory_space<vmem>>, vector<8x128xf32>
    tpu.vector_store %arg14[%c0_47, %c0_48], %94 {strides = array<i32>} : memref<8x128xf32, #tpu.memory_space<vmem>>, vector<8x128xf32>,
    return
  }
  func.func @transform_0(%arg0: i32) -> (i32, i32) {
    %c0_i32 = arith.constant 0 : i32
    %c0_i32_0 = arith.constant 0 : i32
    return %arg0, %c0_i32 : i32, i32
  }
  func.func @transform_1(%arg0: i32) -> (i32, i32, i32) {
    %c0_i32 = arith.constant 0 : i32
    %c0_i32_0 = arith.constant 0 : i32
    %c0_i32_1 = arith.constant 0 : i32
    return %arg0, %c0_i32, %c0_i32_0 : i32, i32, i32
  }
  func.func @transform_2(%arg0: i32) -> (i32, i32, i32) {
    %c0_i32 = arith.constant 0 : i32
    %c0_i32_0 = arith.constant 0 : i32
    %c0_i32_1 = arith.constant 0 : i32
    %c0_i32_2 = arith.constant 0 : i32
    return %c0_i32, %c0_i32_0, %c0_i32_1 : i32, i32, i32
  }
  func.func @transform_3(%arg0: i32) -> (i32, i32, i32) {
    %c0_i32 = arith.constant 0 : i32
    %c0_i32_0 = arith.constant 0 : i32
    %c0_i32_1 = arith.constant 0 : i32
    %c0_i32_2 = arith.constant 0 : i32
    return %c0_i32, %c0_i32_0, %c0_i32_1 : i32, i32, i32
  }
  func.func @transform_4(%arg0: i32) -> (i32, i32) {
    %c0_i32 = arith.constant 0 : i32
    %c0_i32_0 = arith.constant 0 : i32
    return %arg0, %c0_i32 : i32, i32
  }
  func.func @transform_5(%arg0: i32) -> (i32, i32) {
    %c0_i32 = arith.constant 0 : i32
    %c0_i32_0 = arith.constant 0 : i32
    return %arg0, %c0_i32 : i32, i32
  }
  func.func @transform_6(%arg0: i32) -> (i32, i32) {
    %c0_i32 = arith.constant 0 : i32
    %c0_i32_0 = arith.constant 0 : i32
    %c0_i32_1 = arith.constant 0 : i32
    return %c0_i32, %c0_i32_0 : i32, i32
  }
  func.func @transform_7(%arg0: i32) -> (i32, i32) {
    %c0_i32 = arith.constant 0 : i32
    %c0_i32_0 = arith.constant 0 : i32
    %c0_i32_1 = arith.constant 0 : i32
    return %c0_i32, %c0_i32_0 : i32, i32
  }
  func.func @transform_8(%arg0: i32) -> (i32, i32) {
    %c0_i32 = arith.constant 0 : i32
    %c0_i32_0 = arith.constant 0 : i32
    %c0_i32_1 = arith.constant 0 : i32
    return %c0_i32, %c0_i32_0 : i32, i32
  }
  func.func @transform_9(%arg0: i32) -> (i32, i32, i32) {
    %c0_i32 = arith.constant 0 : i32
    %c0_i32_0 = arith.constant 0 : i32
    %c0_i32_1 = arith.constant 0 : i32
    %c0_i32_2 = arith.constant 0 : i32
    return %c0_i32, %c0_i32_0, %c0_i32_1 : i32, i32, i32
  }
  func.func @transform_10(%arg0: i32) -> (i32, i32, i32) {
    %c0_i32 = arith.constant 0 : i32
    %c0_i32_0 = arith.constant 0 : i32
    %c0_i32_1 = arith.constant 0 : i32
    %c0_i32_2 = arith.constant 0 : i32
    return %c0_i32, %c0_i32_0, %c0_i32_1 : i32, i32, i32
  }
  func.func @transform_11(%arg0: i32) -> (i32, i32) {
    %c0_i32 = arith.constant 0 : i32
    %c0_i32_0 = arith.constant 0 : i32
    %c0_i32_1 = arith.constant 0 : i32
    return %c0_i32, %c0_i32_0 : i32, i32
  }
  func.func @transform_12(%arg0: i32) -> (i32, i32) {
    %c0_i32 = arith.constant 0 : i32
    %c0_i32_0 = arith.constant 0 : i32
    %c0_i32_1 = arith.constant 0 : i32
    return %c0_i32, %c0_i32_0 : i32, i32
  }
  func.func @transform_13(%arg0: i32) -> (i32, i32) {
    %c0_i32 = arith.constant 0 : i32
    %c0_i32_0 = arith.constant 0 : i32
    return %arg0, %c0_i32 : i32, i32
  }
}

</mosaic_0001>

<llo_original>
// kernel: nlq_model5_forward.1
$region0: #{nlq_model5_forward.1}
  #allocation0 [shape = 'u32[]', space=smem, size = 0x4, offset = 0x4, fixed_abs, tag = 'smem constant byte address 0x4 - core index']
  #allocation1 [shape = 'u32[144,128]{1,0:T(1,128)}', space=vmem, size = 0x12000, scoped, tag = 'internal scratch']
  %s0 = inlined_call_operand.vmem [shape: bf16[10,128], index: 0, kind: input, shape index: {}]
  %s1 = inlined_call_operand.vmem [shape: bf16[10,16,128], index: 1, kind: input, shape index: {}]
  %s2 = inlined_call_operand.vmem [shape: bf16[1,16,128], index: 2, kind: input, shape index: {}]
  %s3 = inlined_call_operand.vmem [shape: s32[1,16,1], index: 3, kind: input, shape index: {}]
  %s4 = inlined_call_operand.vmem [shape: s32[10,1], index: 4, kind: input, shape index: {}]
  %s5 = inlined_call_operand.vmem [shape: s32[10,1], index: 5, kind: input, shape index: {}]
  %s6 = inlined_call_operand.vmem [shape: bf16[16,128], index: 6, kind: input, shape index: {}]
  %s7 = inlined_call_operand.vmem [shape: bf16[16,128], index: 7, kind: input, shape index: {}]
  %s8 = inlined_call_operand.vmem [shape: f32[1,128], index: 8, kind: input, shape index: {}]
  %s9 = inlined_call_operand.vmem [shape: f32[1,1,128], index: 9, kind: input, shape index: {}]
  %s10 = inlined_call_operand.vmem [shape: f32[1,1,128], index: 10, kind: input, shape index: {}]
  %s11 = inlined_call_operand.vmem [shape: bf16[128,128], index: 11, kind: input, shape index: {}]
  %s12 = inlined_call_operand.vmem [shape: f32[1,128], index: 12, kind: input, shape index: {}]
  %s13 = inlined_call_operand.vmem [shape: f32[10,128], index: 13, kind: output, shape index: {}]
  %s14 = sld [smem:[#allocation0]]
  $region85: #{nlq_model5_forward.1} parent=0
    _
  %s16 = ssub.s32 1, %s14
  %s17 = scalar_select 0, %s16, %s14
  loop: start=0, step=1, limit=4
  $region2: #{nlq_model5_forward.1} parent=0 // loop_pre_header
    _
  $region3: #{nlq_model5_forward.1} parent=0 // loop_header
    %s19 = sphi 0, %s23
    %p20 = scmp.ge.s32.totalorder %s19, 4
    %s29 = sphi 0, %s31
    %s32 = sphi 0, %s29
    %s33 = sphi 0, %s32
    %s49 = sphi 0, %s33
    %s55 = sphi 0, %s57
    %s58 = sphi 0, %s55
    %s59 = sphi 0, %s58
    %s75 = sphi 0, %s59
    %s79 = sphi 0, %s79
    %s81 = sphi 0, %s79
    %s82 = sphi 0, %s81
    %s96 = sphi 0, %s82
    %s100 = sphi 0, %s100
    %s102 = sphi 0, %s100
    %s103 = sphi 0, %s102
    %s117 = sphi 0, %s103
    %s123 = sphi 0, %s125
    %s126 = sphi 0, %s123
    %s127 = sphi 0, %s126
    %s143 = sphi 0, %s127
    %s149 = sphi 0, %s151
    %s152 = sphi 0, %s149
    %s153 = sphi 0, %s152
    %s169 = sphi 0, %s153
    %s173 = sphi 0, %s173
    %s175 = sphi 0, %s173
    %s176 = sphi 0, %s175
    %s190 = sphi 0, %s176
    %s194 = sphi 0, %s194
    %s196 = sphi 0, %s194
    %s197 = sphi 0, %s196
    %s211 = sphi 0, %s197
    %s215 = sphi 0, %s215
    %s217 = sphi 0, %s215
    %s218 = sphi 0, %s217
    %s232 = sphi 0, %s218
    %s236 = sphi 0, %s236
    %s238 = sphi 0, %s236
    %s239 = sphi 0, %s238
    %s253 = sphi 0, %s239
    %s257 = sphi 0, %s257
    %s259 = sphi 0, %s257
    %s260 = sphi 0, %s259
    %s274 = sphi 0, %s260
    %s278 = sphi 0, %s278
    %s280 = sphi 0, %s278
    %s281 = sphi 0, %s280
    %s295 = sphi 0, %s281
    %s299 = sphi 0, %s299
    %s301 = sphi 0, %s299
    %s302 = sphi 0, %s301
    %s316 = sphi 0, %s302
    %s322 = sphi 0, %s324
    %s325 = sphi 0, %s322
    %s326 = sphi 0, %s325
    %s342 = sphi 0, %s326
  $region4: #{nlq_model5_forward.1} parent=0 // loop_header_branch
    %22 = sbr.rel (%p20) target = $region8
  $region5: #{nlq_model5_forward.1} parent=0 // loop_body
    %s24 = ssub.s32 %s19, 1
    %s25 = ssub.s32 %s19, 2
    %s26 = sadd.s32 %s19, 1
    %s27 = ssub.s32 %s19, %s26
    %p28 = scmp.eq.s32.totalorder %s27, 0
    %s30 = sadd.s32 %s29, 1
    %s31 = scalar_select %p28, %s29, %s30
    %p34 = pneg %p28
    %p35 = scmp.eq.s32.totalorder %s19, 1
    %p36 = por %p34, %p35
    %p37 = scmp.ne.s32.totalorder %s29, %s32
    %p38 = scmp.eq.s32.totalorder %s19, 0
    %p39 = por %p37, %p38
    %p40 = scmp.ne.s32.totalorder %s29, %s32
    %p41 = scmp.eq.s32.totalorder %s24, 1
    %p42 = por %p40, %p41
    %p43 = scmp.ne.s32.totalorder %s32, %s33
    %p44 = scmp.eq.s32.totalorder %s24, 0
    %p45 = por %p43, %p44
    %p46 = scmp.ne.s32.totalorder %s32, %s33
    %p47 = scmp.eq.s32.totalorder %s25, 1
    %p48 = por %p46, %p47
    %p50 = scmp.ne.s32.totalorder %s33, %s49
    %p51 = scmp.eq.s32.totalorder %s25, 0
    %p52 = por %p50, %p51
    %s53 = ssub.s32 %s19, %s26
    %p54 = scmp.eq.s32.totalorder %s53, 0
    %s56 = sadd.s32 %s55, 1
    %s57 = scalar_select %p54, %s55, %s56
    %p60 = pneg %p54
    %p61 = scmp.eq.s32.totalorder %s19, 1
    %p62 = por %p60, %p61
    %p63 = scmp.ne.s32.totalorder %s55, %s58
    %p64 = scmp.eq.s32.totalorder %s19, 0
    %p65 = por %p63, %p64
    %p66 = scmp.ne.s32.totalorder %s55, %s58
    %p67 = scmp.eq.s32.totalorder %s24, 1
    %p68 = por %p66, %p67
    %p69 = scmp.ne.s32.totalorder %s58, %s59
    %p70 = scmp.eq.s32.totalorder %s24, 0
    %p71 = por %p69, %p70
    %p72 = scmp.ne.s32.totalorder %s58, %s59
    %p73 = scmp.eq.s32.totalorder %s25, 1
    %p74 = por %p72, %p73
    %p76 = scmp.ne.s32.totalorder %s59, %s75
    %p77 = scmp.eq.s32.totalorder %s25, 0
    %p78 = por %p76, %p77
    %s80 = sadd.s32 %s79, 1
    %p83 = scmp.eq.s32.totalorder %s19, 1
    %p84 = scmp.ne.s32.totalorder %s79, %s81
    %p85 = scmp.eq.s32.totalorder %s19, 0
    %p86 = por %p84, %p85
    %p87 = scmp.ne.s32.totalorder %s79, %s81
    %p88 = scmp.eq.s32.totalorder %s24, 1
    %p89 = por %p87, %p88
    %p90 = scmp.ne.s32.totalorder %s81, %s82
    %p91 = scmp.eq.s32.totalorder %s24, 0
    %p92 = por %p90, %p91
    %p93 = scmp.ne.s32.totalorder %s81, %s82
    %p94 = scmp.eq.s32.totalorder %s25, 1
    %p95 = por %p93, %p94
    %p97 = scmp.ne.s32.totalorder %s82, %s96
    %p98 = scmp.eq.s32.totalorder %s25, 0
    %p99 = por %p97, %p98
    %s101 = sadd.s32 %s100, 1
    %p104 = scmp.eq.s32.totalorder %s19, 1
    %p105 = scmp.ne.s32.totalorder %s100, %s102
    %p106 = scmp.eq.s32.totalorder %s19, 0
    %p107 = por %p105, %p106
    %p108 = scmp.ne.s32.totalorder %s100, %s102
    %p109 = scmp.eq.s32.totalorder %s24, 1
    %p110 = por %p108, %p109
    %p111 = scmp.ne.s32.totalorder %s102, %s103
    %p112 = scmp.eq.s32.totalorder %s24, 0
    %p113 = por %p111, %p112
    %p114 = scmp.ne.s32.totalorder %s102, %s103
    %p115 = scmp.eq.s32.totalorder %s25, 1
    %p116 = por %p114, %p115
    %p118 = scmp.ne.s32.totalorder %s103, %s117
    %p119 = scmp.eq.s32.totalorder %s25, 0
    %p120 = por %p118, %p119
    %s121 = ssub.s32 %s19, %s26
    %p122 = scmp.eq.s32.totalorder %s121, 0
    %s124 = sadd.s32 %s123, 1
    %s125 = scalar_select %p122, %s123, %s124
    %p128 = pneg %p122
    %p129 = scmp.eq.s32.totalorder %s19, 1
    %p130 = por %p128, %p129
    %p131 = scmp.ne.s32.totalorder %s123, %s126
    %p132 = scmp.eq.s32.totalorder %s19, 0
    %p133 = por %p131, %p132
    %p134 = scmp.ne.s32.totalorder %s123, %s126
    %p135 = scmp.eq.s32.totalorder %s24, 1
    %p136 = por %p134, %p135
    %p137 = scmp.ne.s32.totalorder %s126, %s127
    %p138 = scmp.eq.s32.totalorder %s24, 0
    %p139 = por %p137, %p138
    %p140 = scmp.ne.s32.totalorder %s126, %s127
    %p141 = scmp.eq.s32.totalorder %s25, 1
    %p142 = por %p140, %p141
    %p144 = scmp.ne.s32.totalorder %s127, %s143
    %p145 = scmp.eq.s32.totalorder %s25, 0
    %p146 = por %p144, %p145
    %s147 = ssub.s32 %s19, %s26
    %p148 = scmp.eq.s32.totalorder %s147, 0
    %s150 = sadd.s32 %s149, 1
    %s151 = scalar_select %p148, %s149, %s150
    %p154 = pneg %p148
    %p155 = scmp.eq.s32.totalorder %s19, 1
    %p156 = por %p154, %p155
    %p157 = scmp.ne.s32.totalorder %s149, %s152
    %p158 = scmp.eq.s32.totalorder %s19, 0
    %p159 = por %p157, %p158
    %p160 = scmp.ne.s32.totalorder %s149, %s152
    %p161 = scmp.eq.s32.totalorder %s24, 1
    %p162 = por %p160, %p161
    %p163 = scmp.ne.s32.totalorder %s152, %s153
    %p164 = scmp.eq.s32.totalorder %s24, 0
    %p165 = por %p163, %p164
    %p166 = scmp.ne.s32.totalorder %s152, %s153
    %p167 = scmp.eq.s32.totalorder %s25, 1
    %p168 = por %p166, %p167
    %p170 = scmp.ne.s32.totalorder %s153, %s169
    %p171 = scmp.eq.s32.totalorder %s25, 0
    %p172 = por %p170, %p171
    %s174 = sadd.s32 %s173, 1
    %p177 = scmp.eq.s32.totalorder %s19, 1
    %p178 = scmp.ne.s32.totalorder %s173, %s175
    %p179 = scmp.eq.s32.totalorder %s19, 0
    %p180 = por %p178, %p179
    %p181 = scmp.ne.s32.totalorder %s173, %s175
    %p182 = scmp.eq.s32.totalorder %s24, 1
    %p183 = por %p181, %p182
    %p184 = scmp.ne.s32.totalorder %s175, %s176
    %p185 = scmp.eq.s32.totalorder %s24, 0
    %p186 = por %p184, %p185
    %p187 = scmp.ne.s32.totalorder %s175, %s176
    %p188 = scmp.eq.s32.totalorder %s25, 1
    %p189 = por %p187, %p188
    %p191 = scmp.ne.s32.totalorder %s176, %s190
    %p192 = scmp.eq.s32.totalorder %s25, 0
    %p193 = por %p191, %p192
    %s195 = sadd.s32 %s194, 1
    %p198 = scmp.eq.s32.totalorder %s19, 1
    %p199 = scmp.ne.s32.totalorder %s194, %s196
    %p200 = scmp.eq.s32.totalorder %s19, 0
    %p201 = por %p199, %p200
    %p202 = scmp.ne.s32.totalorder %s194, %s196
    %p203 = scmp.eq.s32.totalorder %s24, 1
    %p204 = por %p202, %p203
    %p205 = scmp.ne.s32.totalorder %s196, %s197
    %p206 = scmp.eq.s32.totalorder %s24, 0
    %p207 = por %p205, %p206
    %p208 = scmp.ne.s32.totalorder %s196, %s197
    %p209 = scmp.eq.s32.totalorder %s25, 1
    %p210 = por %p208, %p209
    %p212 = scmp.ne.s32.totalorder %s197, %s211
    %p213 = scmp.eq.s32.totalorder %s25, 0
    %p214 = por %p212, %p213
    %s216 = sadd.s32 %s215, 1
    %p219 = scmp.eq.s32.totalorder %s19, 1
    %p220 = scmp.ne.s32.totalorder %s215, %s217
    %p221 = scmp.eq.s32.totalorder %s19, 0
    %p222 = por %p220, %p221
    %p223 = scmp.ne.s32.totalorder %s215, %s217
    %p224 = scmp.eq.s32.totalorder %s24, 1
    %p225 = por %p223, %p224
    %p226 = scmp.ne.s32.totalorder %s217, %s218
    %p227 = scmp.eq.s32.totalorder %s24, 0
    %p228 = por %p226, %p227
    %p229 = scmp.ne.s32.totalorder %s217, %s218
    %p230 = scmp.eq.s32.totalorder %s25, 1
    %p231 = por %p229, %p230
    %p233 = scmp.ne.s32.totalorder %s218, %s232
    %p234 = scmp.eq.s32.totalorder %s25, 0
    %p235 = por %p233, %p234
    %s237 = sadd.s32 %s236, 1
    %p240 = scmp.eq.s32.totalorder %s19, 1
    %p241 = scmp.ne.s32.totalorder %s236, %s238
    %p242 = scmp.eq.s32.totalorder %s19, 0
    %p243 = por %p241, %p242
    %p244 = scmp.ne.s32.totalorder %s236, %s238
    %p245 = scmp.eq.s32.totalorder %s24, 1
    %p246 = por %p244, %p245
    %p247 = scmp.ne.s32.totalorder %s238, %s239
    %p248 = scmp.eq.s32.totalorder %s24, 0
    %p249 = por %p247, %p248
    %p250 = scmp.ne.s32.totalorder %s238, %s239
    %p251 = scmp.eq.s32.totalorder %s25, 1
    %p252 = por %p250, %p251
    %p254 = scmp.ne.s32.totalorder %s239, %s253
    %p255 = scmp.eq.s32.totalorder %s25, 0
    %p256 = por %p254, %p255
    %s258 = sadd.s32 %s257, 1
    %p261 = scmp.eq.s32.totalorder %s19, 1
    %p262 = scmp.ne.s32.totalorder %s257, %s259
    %p263 = scmp.eq.s32.totalorder %s19, 0
    %p264 = por %p262, %p263
    %p265 = scmp.ne.s32.totalorder %s257, %s259
    %p266 = scmp.eq.s32.totalorder %s24, 1
    %p267 = por %p265, %p266
    %p268 = scmp.ne.s32.totalorder %s259, %s260
    %p269 = scmp.eq.s32.totalorder %s24, 0
    %p270 = por %p268, %p269
    %p271 = scmp.ne.s32.totalorder %s259, %s260
    %p272 = scmp.eq.s32.totalorder %s25, 1
    %p273 = por %p271, %p272
    %p275 = scmp.ne.s32.totalorder %s260, %s274
    %p276 = scmp.eq.s32.totalorder %s25, 0
    %p277 = por %p275, %p276
    %s279 = sadd.s32 %s278, 1
    %p282 = scmp.eq.s32.totalorder %s19, 1
    %p283 = scmp.ne.s32.totalorder %s278, %s280
    %p284 = scmp.eq.s32.totalorder %s19, 0
    %p285 = por %p283, %p284
    %p286 = scmp.ne.s32.totalorder %s278, %s280
    %p287 = scmp.eq.s32.totalorder %s24, 1
    %p288 = por %p286, %p287
    %p289 = scmp.ne.s32.totalorder %s280, %s281
    %p290 = scmp.eq.s32.totalorder %s24, 0
    %p291 = por %p289, %p290
    %p292 = scmp.ne.s32.totalorder %s280, %s281
    %p293 = scmp.eq.s32.totalorder %s25, 1
    %p294 = por %p292, %p293
    %p296 = scmp.ne.s32.totalorder %s281, %s295
    %p297 = scmp.eq.s32.totalorder %s25, 0
    %p298 = por %p296, %p297
    %s300 = sadd.s32 %s299, 1
    %p303 = scmp.eq.s32.totalorder %s19, 1
    %p304 = scmp.ne.s32.totalorder %s299, %s301
    %p305 = scmp.eq.s32.totalorder %s19, 0
    %p306 = por %p304, %p305
    %p307 = scmp.ne.s32.totalorder %s299, %s301
    %p308 = scmp.eq.s32.totalorder %s24, 1
    %p309 = por %p307, %p308
    %p310 = scmp.ne.s32.totalorder %s301, %s302
    %p311 = scmp.eq.s32.totalorder %s24, 0
    %p312 = por %p310, %p311
    %p313 = scmp.ne.s32.totalorder %s301, %s302
    %p314 = scmp.eq.s32.totalorder %s25, 1
    %p315 = por %p313, %p314
    %p317 = scmp.ne.s32.totalorder %s302, %s316
    %p318 = scmp.eq.s32.totalorder %s25, 0
    %p319 = por %p317, %p318
    %s320 = ssub.s32 %s19, %s26
    %p321 = scmp.eq.s32.totalorder %s320, 0
    %s323 = sadd.s32 %s322, 1
    %s324 = scalar_select %p321, %s322, %s323
    %p327 = pneg %p321
    %p328 = scmp.eq.s32.totalorder %s19, 1
    %p329 = por %p327, %p328
    %p330 = scmp.ne.s32.totalorder %s322, %s325
    %p331 = scmp.eq.s32.totalorder %s19, 0
    %p332 = por %p330, %p331
    %p333 = scmp.ne.s32.totalorder %s322, %s325
    %p334 = scmp.eq.s32.totalorder %s24, 1
    %p335 = por %p333, %p334
    %p336 = scmp.ne.s32.totalorder %s325, %s326
    %p337 = scmp.eq.s32.totalorder %s24, 0
    %p338 = por %p336, %p337
    %p339 = scmp.ne.s32.totalorder %s325, %s326
    %p340 = scmp.eq.s32.totalorder %s25, 1
    %p341 = por %p339, %p340
    %p343 = scmp.ne.s32.totalorder %s326, %s342
    %p344 = scmp.eq.s32.totalorder %s25, 0
    %p345 = por %p343, %p344
    %p346 = scmp.le.s32.totalorder 1, %s19
    %p347 = scmp.lt.s32.totalorder %s19, 3
    %p348 = pnand %p346, %p347
    %p349 = pneg %p348
    // Predicated region
    $region9: #{nlq_model5_forward.1} parent=5 // pred_check
      _
    $region10: #{nlq_model5_forward.1} parent=5 // pred_check_branch
      %351 = sbr.rel (%p348) target = $region12
    $region11: #{nlq_model5_forward.1} parent=5 // pred_region
      %s352 = ssub.s32 %s19, 1
      // Predicated region
      $region13: #{nlq_model5_forward.1} parent=11 // pred_check
        %p353 = pneg %p92
      $region14: #{nlq_model5_forward.1} parent=11 // pred_check_branch
        %355 = sbr.rel (%p353) target = $region16
      $region15: #{nlq_model5_forward.1} parent=11 // pred_region
        _
      $region16: #{nlq_model5_forward.1} parent=11 // pred_fallthru
        _
      // Predicated region
      $region17: #{nlq_model5_forward.1} parent=11 // pred_check
        %p356 = pneg %p113
      $region18: #{nlq_model5_forward.1} parent=11 // pred_check_branch
        %358 = sbr.rel (%p356) target = $region20
      $region19: #{nlq_model5_forward.1} parent=11 // pred_region
        _
      $region20: #{nlq_model5_forward.1} parent=11 // pred_fallthru
        _
      // Predicated region
      $region21: #{nlq_model5_forward.1} parent=11 // pred_check
        %p359 = pneg %p186
      $region22: #{nlq_model5_forward.1} parent=11 // pred_check_branch
        %361 = sbr.rel (%p359) target = $region24
      $region23: #{nlq_model5_forward.1} parent=11 // pred_region
        _
      $region24: #{nlq_model5_forward.1} parent=11 // pred_fallthru
        _
      // Predicated region
      $region25: #{nlq_model5_forward.1} parent=11 // pred_check
        %p362 = pneg %p207
      $region26: #{nlq_model5_forward.1} parent=11 // pred_check_branch
        %364 = sbr.rel (%p362) target = $region28
      $region27: #{nlq_model5_forward.1} parent=11 // pred_region
        _
      $region28: #{nlq_model5_forward.1} parent=11 // pred_fallthru
        _
      // Predicated region
      $region29: #{nlq_model5_forward.1} parent=11 // pred_check
        %p365 = pneg %p228
      $region30: #{nlq_model5_forward.1} parent=11 // pred_check_branch
        %367 = sbr.rel (%p365) target = $region32
      $region31: #{nlq_model5_forward.1} parent=11 // pred_region
        _
      $region32: #{nlq_model5_forward.1} parent=11 // pred_fallthru
        _
      // Predicated region
      $region33: #{nlq_model5_forward.1} parent=11 // pred_check
        %p368 = pneg %p249
      $region34: #{nlq_model5_forward.1} parent=11 // pred_check_branch
        %370 = sbr.rel (%p368) target = $region36
      $region35: #{nlq_model5_forward.1} parent=11 // pred_region
        _
      $region36: #{nlq_model5_forward.1} parent=11 // pred_fallthru
        _
      // Predicated region
      $region37: #{nlq_model5_forward.1} parent=11 // pred_check
        %p371 = pneg %p270
      $region38: #{nlq_model5_forward.1} parent=11 // pred_check_branch
        %373 = sbr.rel (%p371) target = $region40
      $region39: #{nlq_model5_forward.1} parent=11 // pred_region
        _
      $region40: #{nlq_model5_forward.1} parent=11 // pred_fallthru
        _
      // Predicated region
      $region41: #{nlq_model5_forward.1} parent=11 // pred_check
        %p374 = pneg %p291
      $region42: #{nlq_model5_forward.1} parent=11 // pred_check_branch
        %376 = sbr.rel (%p374) target = $region44
      $region43: #{nlq_model5_forward.1} parent=11 // pred_region
        _
      $region44: #{nlq_model5_forward.1} parent=11 // pred_fallthru
        _
      // Predicated region
      $region45: #{nlq_model5_forward.1} parent=11 // pred_check
        %p377 = pneg %p312
      $region46: #{nlq_model5_forward.1} parent=11 // pred_check_branch
        %379 = sbr.rel (%p377) target = $region48
      $region47: #{nlq_model5_forward.1} parent=11 // pred_region
        _
      $region48: #{nlq_model5_forward.1} parent=11 // pred_fallthru
        _
    $region12: #{nlq_model5_forward.1} parent=5 // pred_fallthru
      _
    %p380 = scmp.lt.s32.totalorder %s19, 2
    // Predicated region
    $region49: #{nlq_model5_forward.1} parent=5 // pred_check
      %p381 = pneg %p380
    $region50: #{nlq_model5_forward.1} parent=5 // pred_check_branch
      %383 = sbr.rel (%p381) target = $region52
    $region51: #{nlq_model5_forward.1} parent=5 // pred_region
      // Predicated region
      $region53: #{nlq_model5_forward.1} parent=51 // pred_check
        %p384 = pneg %p39
      $region54: #{nlq_model5_forward.1} parent=51 // pred_check_branch
        %386 = sbr.rel (%p384) target = $region56
      $region55: #{nlq_model5_forward.1} parent=51 // pred_region
        %p387 = scmp.lt.s32.totalorder %s19, 1
        %s388 = scalar_select %p387, %s19, 1
        %s389 = smul.addr %s388, 4
        %s390 = scalar_lea.vmem %s0, %s389
      $region56: #{nlq_model5_forward.1} parent=51 // pred_fallthru
        _
      // Predicated region
      $region57: #{nlq_model5_forward.1} parent=51 // pred_check
        %p391 = pneg %p65
      $region58: #{nlq_model5_forward.1} parent=51 // pred_check_branch
        %393 = sbr.rel (%p391) target = $region60
      $region59: #{nlq_model5_forward.1} parent=51 // pred_region
        %s394 = smul.u32 8, %s19
        %s395 = ssub.s32 10, %s394
        %p396 = scmp.lt.s32.totalorder %s395, 8
        %s397 = scalar_select %p396, %s395, 8
        %s398 = smul.u32 64, %s397
        %s399 = smul.u32 %s398, 2
        %p400 = scmp.lt.s32.totalorder %s394, 9
        %s401 = scalar_select %p400, %s394, 9
        %s402 = smul.addr %s401, 2
        %s403 = smul.addr %s402, 4
        %s404 = scalar_lea.vmem %s1, %s403
        %s405 = smul.u32 8, %s19
        %s406 = ssub.s32 10, %s405
        %p407 = scmp.lt.s32.totalorder %s406, 8
        %s408 = scalar_select %p407, %s406, 8
        %s409 = smul.u32 64, %s408
        %s410 = smul.u32 %s409, 2
      $region60: #{nlq_model5_forward.1} parent=51 // pred_fallthru
        _
      // Predicated region
      $region61: #{nlq_model5_forward.1} parent=51 // pred_check
        %p411 = pneg %p133
      $region62: #{nlq_model5_forward.1} parent=51 // pred_check_branch
        %413 = sbr.rel (%p411) target = $region64
      $region63: #{nlq_model5_forward.1} parent=51 // pred_region
        %p414 = scmp.lt.s32.totalorder %s19, 1
        %s415 = scalar_select %p414, %s19, 1
        %s416 = smul.addr %s415, 8
        %s417 = scalar_lea.vmem %s4, %s416
      $region64: #{nlq_model5_forward.1} parent=51 // pred_fallthru
        _
      // Predicated region
      $region65: #{nlq_model5_forward.1} parent=51 // pred_check
        %p418 = pneg %p159
      $region66: #{nlq_model5_forward.1} parent=51 // pred_check_branch
        %420 = sbr.rel (%p418) target = $region68
      $region67: #{nlq_model5_forward.1} parent=51 // pred_region
        %p421 = scmp.lt.s32.totalorder %s19, 1
        %s422 = scalar_select %p421, %s19, 1
        %s423 = smul.addr %s422, 8
        %s424 = scalar_lea.vmem %s5, %s423
      $region68: #{nlq_model5_forward.1} parent=51 // pred_fallthru
        _
    $region52: #{nlq_model5_forward.1} parent=5 // pred_fallthru
      _
    %p425 = scmp.le.s32.totalorder 1, %s19
    %p426 = scmp.lt.s32.totalorder %s19, 3
    %p427 = pnand %p425, %p426
    %p428 = pneg %p427
    // Predicated region
    $region69: #{nlq_model5_forward.1} parent=5 // pred_check
      _
    $region70: #{nlq_model5_forward.1} parent=5 // pred_check_branch
      %430 = sbr.rel (%p427) target = $region72
    $region71: #{nlq_model5_forward.1} parent=5 // pred_region
      %s431 = ssub.s32 %s19, 1
      %p432 = scmp.lt.s32.totalorder %s24, 1
      %s433 = scalar_select %p432, %s24, 1
      %s434 = smul.addr %s433, 4
      %s435 = scalar_lea.vmem %s0, %s434
      %p436 = pneg %p45
      %p437 = pneg %p42
      %s438 = smul.u32 8, %s24
      %s439 = ssub.s32 10, %s438
      %p440 = scmp.lt.s32.totalorder %s439, 8
      %s441 = scalar_select %p440, %s439, 8
      %s442 = smul.u32 64, %s441
      %s443 = smul.u32 %s442, 2
      %p444 = scmp.lt.s32.totalorder %s438, 9
      %s445 = scalar_select %p444, %s438, 9
      %s446 = smul.addr %s445, 2
      %s447 = smul.addr %s446, 4
      %s448 = scalar_lea.vmem %s1, %s447
      %p449 = pneg %p71
      %p450 = pneg %p68
      %p451 = pneg %p92
      %p452 = pneg %p89
      %p453 = pneg %p113
      %p454 = pneg %p110
      %p455 = scmp.lt.s32.totalorder %s24, 1
      %s456 = scalar_select %p455, %s24, 1
      %s457 = smul.addr %s456, 8
      %s458 = scalar_lea.vmem %s4, %s457
      %p459 = pneg %p139
      %p460 = pneg %p136
      %p461 = scmp.lt.s32.totalorder %s24, 1
      %s462 = scalar_select %p461, %s24, 1
      %s463 = smul.addr %s462, 8
      %s464 = scalar_lea.vmem %s5, %s463
      %p465 = pneg %p165
      %p466 = pneg %p162
      %p467 = pneg %p186
      %p468 = pneg %p183
      %p469 = pneg %p207
      %p470 = pneg %p204
      %p471 = pneg %p228
      %p472 = pneg %p225
      %p473 = pneg %p249
      %p474 = pneg %p246
      %p475 = pneg %p270
      %p476 = pneg %p267
      %p477 = pneg %p291
      %p478 = pneg %p288
      %p479 = pneg %p312
      %p480 = pneg %p309
      %p481 = pneg %p338
      %p482 = pneg %p335
      %p483 = scmp.lt.s32.totalorder %s24, 1
      %s484 = scalar_select %p483, %s24, 1
      %s485 = smul.addr %s484, 8
      %s486 = scalar_lea.vmem %s13, %s485
      %p487 = scmp.lt.s32.totalorder %s24, 1
      %s488 = scalar_select %p487, %s24, 1
      %s489 = smul.addr %s488, 4
      %s490 = scalar_lea.vmem %s0, %s489
      %s491 = smul.u32 8, %s24
      %s492 = ssub.s32 10, %s491
      %p493 = scmp.lt.s32.totalorder %s492, 8
      %s494 = scalar_select %p493, %s492, 8
      %s495 = smul.u32 64, %s494
      %s496 = smul.u32 %s495, 2
      %p497 = scmp.lt.s32.totalorder %s491, 9
      %s498 = scalar_select %p497, %s491, 9
      %s499 = smul.addr %s498, 2
      %s500 = smul.addr %s499, 4
      %s501 = scalar_lea.vmem %s1, %s500
      %s502 = smul.u32 8, %s24
      %s503 = ssub.s32 10, %s502
      %p504 = scmp.lt.s32.totalorder %s503, 8
      %s505 = scalar_select %p504, %s503, 8
      %s506 = smul.u32 64, %s505
      %s507 = smul.u32 %s506, 2
      %p508 = scmp.lt.s32.totalorder %s24, 1
      %s509 = scalar_select %p508, %s24, 1
      %s510 = smul.addr %s509, 8
      %s511 = scalar_lea.vmem %s4, %s510
      %p512 = scmp.lt.s32.totalorder %s24, 1
      %s513 = scalar_select %p512, %s24, 1
      %s514 = smul.addr %s513, 8
      %s515 = scalar_lea.vmem %s5, %s514
      %p516 = scmp.lt.s32.totalorder %s24, 1
      %s517 = scalar_select %p516, %s24, 1
      %s518 = smul.addr %s517, 8
      %s519 = scalar_lea.vmem %s13, %s518
      %v521 = vld [vmem:[%s490] sm:$0xf]
      %v522 = vld [vmem:[%s6] sm:$0xf]
      %v523 = vld [vmem:[%s6 + $0x4] sm:$0xf]
      %v526 = vunpack.c.l.b16 %v522
      %v527 = vunpack.c.l.b16 %v523
      %v528 = vpack.c.b16 %v527, %v526
      %530 = vmatprep.subr.bf16.mxu0 0
      %531 = vmatpush1.bf16.xpose.msra.mxu0 %v528
      %532 = vmatprep.subr.bf16.mxu0 0
      %533 = vmatpush1.bf16.xpose.msra.mxu0 0
      %534 = vmatprep.subr.bf16.mxu0 0
      %535 = vmatpush1.bf16.xpose.msra.mxu0 0
      %536 = vmatprep.subr.bf16.mxu0 0
      %537 = vmatpush1.bf16.xpose.msra.mxu0 0
      %538 = vmatprep.subr.bf16.mxu0 0
      %539 = vmatpush1.bf16.xpose.msra.mxu0 0
      %540 = vmatprep.subr.bf16.mxu0 0
      %541 = vmatpush1.bf16.xpose.msra.mxu0 0
      %542 = vmatprep.subr.bf16.mxu0 0
      %543 = vmatpush1.bf16.xpose.msra.mxu0 0
      %544 = vmatprep.subr.bf16.mxu0 0
      %545 = vmatpush1.bf16.xpose.msra.mxu0 0
      %546 = vmatprep.subr.bf16.mxu0 0
      %547 = vmatpush1.bf16.xpose.msra.mxu0 0
      %548 = vmatprep.subr.bf16.mxu0 0
      %549 = vmatpush1.bf16.xpose.msra.mxu0 0
      %550 = vmatprep.subr.bf16.mxu0 0
      %551 = vmatpush1.bf16.xpose.msra.mxu0 0
      %552 = vmatprep.subr.bf16.mxu0 0
      %553 = vmatpush1.bf16.xpose.msra.mxu0 0
      %554 = vmatprep.subr.bf16.mxu0 0
      %555 = vmatpush1.bf16.xpose.msra.mxu0 0
      %556 = vmatprep.subr.bf16.mxu0 0
      %557 = vmatpush1.bf16.xpose.msra.mxu0 0
      %558 = vmatprep.subr.bf16.mxu0 0
      %559 = vmatpush1.bf16.xpose.msra.mxu0 0
      %560 = vmatprep.subr.bf16.mxu0 0
      %561 = vmatpush1.bf16.xpose.msra.mxu0 0
      %562 = vmatprep.mubr.bf16.mxu0 0
      %563 = vmatmul.mubr.bf16.gmra.mrb[0].mxu0 %v521
      %v564 = vpop.f32.mrb[0].mxu0
      %v565 = vadd.f32 0.0, %v564
      %v566 = vpop.f32.mrb[0].mxu0
      %v567 = vpop.f32.mrb[0].mxu0
      %v568 = vpop.f32.mrb[0].mxu0
      %569 = vdwg.mxu0
      %vm570 = vcmask 130048
      %v571 = vsel %vm570, %v565, -inf
      %572 = vmax.xlane.f32.xlu0 %v571
      %v573 = vpop.xlane.xlu0 %572
      %v574 = vsub.f32 %v565, %v573
      %v575 = vmul.f32 %v574, 1.442695
      %v576 = vpow.pop %v575
      %v577 = vsel %vm570, %v576, 0.0
      %578 = vadd.xlane.f32.xlu0 %v577
      %v579 = vpop.xlane.xlu0 %578
      %v580 = vrcp.pop %v579
      %v581 = vmul.f32 %v576, %v580
      %v582 = vpack.c.bf16 %v581, %v581
      %v583 = vld [vmem:[%s7] sm:$0xf]
      %v584 = vld [vmem:[%s7 + $0x4] sm:$0xf]
      %v585 = vld [vmem:[%s8] sm:$0x1]
      %v587 = vlaneseq
      %v588 = vshrl.u32 %v587, 7
      %v589 = vsub.s32 0, %v588
      %v590 = vrot.slane %v585, %v589
      %v594 = vunpack.c.l.b16 %v583
      %v595 = vunpack.c.l.b16 %v584
      %v596 = vpack.c.b16 %v595, %v594
      %v599 = vsel %vm570, %v582, 0
      %601 = vmatprep.subr.bf16.mxu0 0
      %602 = vmatpush1.bf16.msra.mxu0 %v596
      %603 = vmatprep.subr.bf16.mxu0 0
      %604 = vmatpush1.bf16.msra.mxu0 0
      %605 = vmatprep.subr.bf16.mxu0 0
      %606 = vmatpush1.bf16.msra.mxu0 0
      %607 = vmatprep.subr.bf16.mxu0 0
      %608 = vmatpush1.bf16.msra.mxu0 0
      %609 = vmatprep.subr.bf16.mxu0 0
      %610 = vmatpush1.bf16.msra.mxu0 0
      %611 = vmatprep.subr.bf16.mxu0 0
      %612 = vmatpush1.bf16.msra.mxu0 0
      %613 = vmatprep.subr.bf16.mxu0 0
      %614 = vmatpush1.bf16.msra.mxu0 0
      %615 = vmatprep.subr.bf16.mxu0 0
      %616 = vmatpush1.bf16.msra.mxu0 0
      %617 = vmatprep.subr.bf16.mxu0 0
      %618 = vmatpush1.bf16.msra.mxu0 0
      %619 = vmatprep.subr.bf16.mxu0 0
      %620 = vmatpush1.bf16.msra.mxu0 0
      %621 = vmatprep.subr.bf16.mxu0 0
      %622 = vmatpush1.bf16.msra.mxu0 0
      %623 = vmatprep.subr.bf16.mxu0 0
      %624 = vmatpush1.bf16.msra.mxu0 0
      %625 = vmatprep.subr.bf16.mxu0 0
      %626 = vmatpush1.bf16.msra.mxu0 0
      %627 = vmatprep.subr.bf16.mxu0 0
      %628 = vmatpush1.bf16.msra.mxu0 0
      %629 = vmatprep.subr.bf16.mxu0 0
      %630 = vmatpush1.bf16.msra.mxu0 0
      %631 = vmatprep.subr.bf16.mxu0 0
      %632 = vmatpush1.bf16.msra.mxu0 0
      %633 = vmatprep.mubr.bf16.mxu0 0
      %634 = vmatmul.mubr.bf16.gmra.mrb[0].mxu0 %v599
      %v635 = vpop.f32.mrb[0].mxu0
      %v636 = vadd.f32 %v590, %v635
      %v637 = vpop.f32.mrb[0].mxu0
      %v638 = vpop.f32.mrb[0].mxu0
      %v639 = vpop.f32.mrb[0].mxu0
      %640 = vdwg.mxu0
      %v641 = vld [vmem:[%s3] sm:$0xff]
      %v642 = vld [vmem:[%s3 + $0x8] sm:$0xff]
      %vm643 = vcmp.eq.s32.totalorder %v641, 0
      %vm644 = vcmp.eq.s32.totalorder %v642, 0
      %v646 = vcombine.high %v636, %v636
      %v648 = vunpack.c.l.s4 1966171168
      %v649 = vunpack.c.0.s8 %v648
      %v650 = vlaneseq
      %v651 = vshrl.u32 %v650, 7
      %v652 = vsub.s32 %v649, %v651
      %v653 = vrot.slane %v636, %v652
      %v655 = vunpack.c.l.s4 1966171168
      %v656 = vunpack.c.0.s8 %v655
      %v657 = vlaneseq
      %v658 = vshrl.u32 %v657, 7
      %v659 = vsub.s32 %v656, %v658
      %v660 = vrot.slane %v646, %v659
      %v661 = vcombine.high %v653, %v653
      %v662 = vcombine.high %v660, %v660
      %v664 = vunpack.c.l.s4 1966171168
      %v665 = vunpack.c.0.s8 %v664
      %v666 = vlaneseq
      %v667 = vshrl.u32 %v666, 7
      %v668 = vsub.s32 %v665, %v667
      %v669 = vrot.slane %v653, %v668
      %v671 = vunpack.c.l.s4 1966171168
      %v672 = vunpack.c.0.s8 %v671
      %v673 = vlaneseq
      %v674 = vshrl.u32 %v673, 7
      %v675 = vsub.s32 %v672, %v674
      %v676 = vrot.slane %v660, %v675
      %v678 = vunpack.c.l.s4 1966171168
      %v679 = vunpack.c.0.s8 %v678
      %v680 = vlaneseq
      %v681 = vshrl.u32 %v680, 7
      %v682 = vsub.s32 %v679, %v681
      %v683 = vrot.slane %v661, %v682
      %v685 = vunpack.c.l.s4 1966171168
      %v686 = vunpack.c.0.s8 %v685
      %v687 = vlaneseq
      %v688 = vshrl.u32 %v687, 7
      %v689 = vsub.s32 %v686, %v688
      %v690 = vrot.slane %v662, %v689
      %v691 = vcombine.high %v669, %v669
      %v692 = vcombine.high %v676, %v676
      %v693 = vcombine.high %v683, %v683
      %v694 = vcombine.high %v690, %v690
      %v695 = vld [vmem:[%s501] sm:$0xf]
      %v696 = vld [vmem:[%s501 + $0x4] sm:$0xf]
      %v697 = vld [vmem:[%s501 + $0x8] sm:$0xf]
      %v698 = vld [vmem:[%s501 + $0xc] sm:$0xf]
      %v699 = vld [vmem:[%s501 + $0x10] sm:$0xf]
      %v700 = vld [vmem:[%s501 + $0x14] sm:$0xf]
      %v701 = vld [vmem:[%s501 + $0x18] sm:$0xf]
      %v702 = vld [vmem:[%s501 + $0x1c] sm:$0xf]
      %v703 = vld [vmem:[%s501 + $0x20] sm:$0xf]
      %v704 = vld [vmem:[%s501 + $0x24] sm:$0xf]
      %v705 = vld [vmem:[%s501 + $0x28] sm:$0xf]
      %v706 = vld [vmem:[%s501 + $0x2c] sm:$0xf]
      %v707 = vld [vmem:[%s501 + $0x30] sm:$0xf]
      %v708 = vld [vmem:[%s501 + $0x34] sm:$0xf]
      %v709 = vld [vmem:[%s501 + $0x38] sm:$0xf]
      %v710 = vld [vmem:[%s501 + $0x3c] sm:$0xf]
      %v711 = vunpack.c.l.bf16 %v695
      %v712 = vunpack.c.l.bf16 %v696
      %v713 = vunpack.c.l.bf16 %v697
      %v714 = vunpack.c.l.bf16 %v698
      %v715 = vunpack.c.l.bf16 %v699
      %v716 = vunpack.c.l.bf16 %v700
      %v717 = vunpack.c.l.bf16 %v701
      %v718 = vunpack.c.l.bf16 %v702
      %v719 = vunpack.c.l.bf16 %v703
      %v720 = vunpack.c.l.bf16 %v704
      %v721 = vunpack.c.l.bf16 %v705
      %v722 = vunpack.c.l.bf16 %v706
      %v723 = vunpack.c.l.bf16 %v707
      %v724 = vunpack.c.l.bf16 %v708
      %v725 = vunpack.c.l.bf16 %v709
      %v726 = vunpack.c.l.bf16 %v710
      %v727 = vsel %vm643, 1, 0
      %v728 = vsel %vm644, 1, 0
      %729 = vset.pattern.permute.xlu0 0
      %730 = vperm.xlu0 %729, %v727
      %v731 = vpop.permute.xlu0 %730
      %732 = vset.pattern.permute.xlu0 0
      %733 = vperm.xlu0 %732, %v728
      %v734 = vpop.permute.xlu0 %733
      %vm735 = vcmp.eq.s32.totalorder %v731, 1
      %vm736 = vcmp.eq.s32.totalorder %v734, 1
      %v737 = vlaneseq
      %v738 = vshrl.u32 %v737, 7
      %v739 = vsub.s32 0, %v738
      %v740 = vrot.slane %v669, %v739
      %v741 = vlaneseq
      %v742 = vshrl.u32 %v741, 7
      %v743 = vsub.s32 0, %v742
      %v744 = vrot.slane %v683, %v743
      %v745 = vlaneseq
      %v746 = vshrl.u32 %v745, 7
      %v747 = vsub.s32 0, %v746
      %v748 = vrot.slane %v691, %v747
      %v749 = vlaneseq
      %v750 = vshrl.u32 %v749, 7
      %v751 = vsub.s32 0, %v750
      %v752 = vrot.slane %v693, %v751
      %v753 = vlaneseq
      %v754 = vshrl.u32 %v753, 7
      %v755 = vsub.s32 0, %v754
      %v756 = vrot.slane %v676, %v755
      %v757 = vlaneseq
      %v758 = vshrl.u32 %v757, 7
      %v759 = vsub.s32 0, %v758
      %v760 = vrot.slane %v690, %v759
      %v761 = vlaneseq
      %v762 = vshrl.u32 %v761, 7
      %v763 = vsub.s32 0, %v762
      %v764 = vrot.slane %v692, %v763
      %v765 = vlaneseq
      %v766 = vshrl.u32 %v765, 7
      %v767 = vsub.s32 0, %v766
      %v768 = vrot.slane %v694, %v767
      %v777 = vsel %vm735, %v740, %v711
      %v778 = vsel %vm736, %v740, %v712
      %v779 = vsel %vm735, %v744, %v713
      %v780 = vsel %vm736, %v744, %v714
      %v781 = vsel %vm735, %v748, %v715
      %v782 = vsel %vm736, %v748, %v716
      %v783 = vsel %vm735, %v752, %v717
      %v784 = vsel %vm736, %v752, %v718
      %v785 = vsel %vm735, %v756, %v719
      %v786 = vsel %vm736, %v756, %v720
      %v787 = vsel %vm735, %v760, %v721
      %v788 = vsel %vm736, %v760, %v722
      %v789 = vsel %vm735, %v764, %v723
      %v790 = vsel %vm736, %v764, %v724
      %v791 = vsel %vm735, %v768, %v725
      %v792 = vsel %vm736, %v768, %v726
      %v793 = vld [vmem:[%s2] sm:$0xf]
      %v794 = vld [vmem:[%s2 + $0x4] sm:$0xf]
      %v795 = vunpack.c.l.bf16 %v793
      %v796 = vunpack.c.l.bf16 %v794
      %v797 = vadd.f32 %v777, %v795
      %v798 = vadd.f32 %v778, %v796
      %v799 = vadd.f32 %v779, %v795
      %v800 = vadd.f32 %v780, %v796
      %v801 = vadd.f32 %v781, %v795
      %v802 = vadd.f32 %v782, %v796
      %v803 = vadd.f32 %v783, %v795
      %v804 = vadd.f32 %v784, %v796
      %v805 = vadd.f32 %v785, %v795
      %v806 = vadd.f32 %v786, %v796
      %v807 = vadd.f32 %v787, %v795
      %v808 = vadd.f32 %v788, %v796
      %v809 = vadd.f32 %v789, %v795
      %v810 = vadd.f32 %v790, %v796
      %v811 = vadd.f32 %v791, %v795
      %v812 = vadd.f32 %v792, %v796
      %813 = vadd.xlane.f32.xlu0 %v797
      %v814 = vpop.xlane.xlu0 %813
      %815 = vadd.xlane.f32.xlu0 %v798
      %v816 = vpop.xlane.xlu0 %815
      %817 = vadd.xlane.f32.xlu0 %v799
      %v818 = vpop.xlane.xlu0 %817
      %819 = vadd.xlane.f32.xlu0 %v800
      %v820 = vpop.xlane.xlu0 %819
      %821 = vadd.xlane.f32.xlu0 %v801
      %v822 = vpop.xlane.xlu0 %821
      %823 = vadd.xlane.f32.xlu0 %v802
      %v824 = vpop.xlane.xlu0 %823
      %825 = vadd.xlane.f32.xlu0 %v803
      %v826 = vpop.xlane.xlu0 %825
      %827 = vadd.xlane.f32.xlu0 %v804
      %v828 = vpop.xlane.xlu0 %827
      %829 = vadd.xlane.f32.xlu0 %v805
      %v830 = vpop.xlane.xlu0 %829
      %831 = vadd.xlane.f32.xlu0 %v806
      %v832 = vpop.xlane.xlu0 %831
      %833 = vadd.xlane.f32.xlu0 %v807
      %v834 = vpop.xlane.xlu0 %833
      %835 = vadd.xlane.f32.xlu0 %v808
      %v836 = vpop.xlane.xlu0 %835
      %837 = vadd.xlane.f32.xlu0 %v809
      %v838 = vpop.xlane.xlu0 %837
      %839 = vadd.xlane.f32.xlu0 %v810
      %v840 = vpop.xlane.xlu0 %839
      %841 = vadd.xlane.f32.xlu0 %v811
      %v842 = vpop.xlane.xlu0 %841
      %843 = vadd.xlane.f32.xlu0 %v812
      %v844 = vpop.xlane.xlu0 %843
      %v845 = vrcp.pop 128.0
      %v846 = vmul.f32 %v814, %v845
      %v847 = vmul.f32 %v816, %v845
      %v848 = vmul.f32 %v818, %v845
      %v849 = vmul.f32 %v820, %v845
      %v850 = vmul.f32 %v822, %v845
      %v851 = vmul.f32 %v824, %v845
      %v852 = vmul.f32 %v826, %v845
      %v853 = vmul.f32 %v828, %v845
      %v854 = vmul.f32 %v830, %v845
      %v855 = vmul.f32 %v832, %v845
      %v856 = vmul.f32 %v834, %v845
      %v857 = vmul.f32 %v836, %v845
      %v858 = vmul.f32 %v838, %v845
      %v859 = vmul.f32 %v840, %v845
      %v860 = vmul.f32 %v842, %v845
      %v861 = vmul.f32 %v844, %v845
      %v862 = vsub.f32 %v797, %v846
      %v863 = vsub.f32 %v798, %v847
      %v864 = vsub.f32 %v799, %v848
      %v865 = vsub.f32 %v800, %v849
      %v866 = vsub.f32 %v801, %v850
      %v867 = vsub.f32 %v802, %v851
      %v868 = vsub.f32 %v803, %v852
      %v869 = vsub.f32 %v804, %v853
      %v870 = vsub.f32 %v805, %v854
      %v871 = vsub.f32 %v806, %v855
      %v872 = vsub.f32 %v807, %v856
      %v873 = vsub.f32 %v808, %v857
      %v874 = vsub.f32 %v809, %v858
      %v875 = vsub.f32 %v810, %v859
      %v876 = vsub.f32 %v811, %v860
      %v877 = vsub.f32 %v812, %v861
      %v878 = vmul.f32 %v862, %v862
      %v879 = vmul.f32 %v863, %v863
      %v880 = vmul.f32 %v864, %v864
      %v881 = vmul.f32 %v865, %v865
      %v882 = vmul.f32 %v866, %v866
      %v883 = vmul.f32 %v867, %v867
      %v884 = vmul.f32 %v868, %v868
      %v885 = vmul.f32 %v869, %v869
      %v886 = vmul.f32 %v870, %v870
      %v887 = vmul.f32 %v871, %v871
      %v888 = vmul.f32 %v872, %v872
      %v889 = vmul.f32 %v873, %v873
      %v890 = vmul.f32 %v874, %v874
      %v891 = vmul.f32 %v875, %v875
      %v892 = vmul.f32 %v876, %v876
      %v893 = vmul.f32 %v877, %v877
      %894 = vadd.xlane.f32.xlu0 %v878
      %v895 = vpop.xlane.xlu0 %894
      %896 = vadd.xlane.f32.xlu0 %v879
      %v897 = vpop.xlane.xlu0 %896
      %898 = vadd.xlane.f32.xlu0 %v880
      %v899 = vpop.xlane.xlu0 %898
      %900 = vadd.xlane.f32.xlu0 %v881
      %v901 = vpop.xlane.xlu0 %900
      %902 = vadd.xlane.f32.xlu0 %v882
      %v903 = vpop.xlane.xlu0 %902
      %904 = vadd.xlane.f32.xlu0 %v883
      %v905 = vpop.xlane.xlu0 %904
      %906 = vadd.xlane.f32.xlu0 %v884
      %v907 = vpop.xlane.xlu0 %906
      %908 = vadd.xlane.f32.xlu0 %v885
      %v909 = vpop.xlane.xlu0 %908
      %910 = vadd.xlane.f32.xlu0 %v886
      %v911 = vpop.xlane.xlu0 %910
      %912 = vadd.xlane.f32.xlu0 %v887
      %v913 = vpop.xlane.xlu0 %912
      %914 = vadd.xlane.f32.xlu0 %v888
      %v915 = vpop.xlane.xlu0 %914
      %916 = vadd.xlane.f32.xlu0 %v889
      %v917 = vpop.xlane.xlu0 %916
      %918 = vadd.xlane.f32.xlu0 %v890
      %v919 = vpop.xlane.xlu0 %918
      %920 = vadd.xlane.f32.xlu0 %v891
      %v921 = vpop.xlane.xlu0 %920
      %922 = vadd.xlane.f32.xlu0 %v892
      %v923 = vpop.xlane.xlu0 %922
      %924 = vadd.xlane.f32.xlu0 %v893
      %v925 = vpop.xlane.xlu0 %924
      %v926 = vmul.f32 %v895, %v845
      %v927 = vmul.f32 %v897, %v845
      %v928 = vmul.f32 %v899, %v845
      %v929 = vmul.f32 %v901, %v845
      %v930 = vmul.f32 %v903, %v845
      %v931 = vmul.f32 %v905, %v845
      %v932 = vmul.f32 %v907, %v845
      %v933 = vmul.f32 %v909, %v845
      %v934 = vmul.f32 %v911, %v845
      %v935 = vmul.f32 %v913, %v845
      %v936 = vmul.f32 %v915, %v845
      %v937 = vmul.f32 %v917, %v845
      %v938 = vmul.f32 %v919, %v845
      %v939 = vmul.f32 %v921, %v845
      %v940 = vmul.f32 %v923, %v845
      %v941 = vmul.f32 %v925, %v845
      %v942 = vadd.f32 %v926, 1e-05
      %v943 = vadd.f32 %v927, 1e-05
      %v944 = vadd.f32 %v928, 1e-05
      %v945 = vadd.f32 %v929, 1e-05
      %v946 = vadd.f32 %v930, 1e-05
      %v947 = vadd.f32 %v931, 1e-05
      %v948 = vadd.f32 %v932, 1e-05
      %v949 = vadd.f32 %v933, 1e-05
      %v950 = vadd.f32 %v934, 1e-05
      %v951 = vadd.f32 %v935, 1e-05
      %v952 = vadd.f32 %v936, 1e-05
      %v953 = vadd.f32 %v937, 1e-05
      %v954 = vadd.f32 %v938, 1e-05
      %v955 = vadd.f32 %v939, 1e-05
      %v956 = vadd.f32 %v940, 1e-05
      %v957 = vadd.f32 %v941, 1e-05
      %v958 = vrsqrt.pop %v942
      %v959 = vrsqrt.pop %v943
      %v960 = vrsqrt.pop %v944
      %v961 = vrsqrt.pop %v945
      %v962 = vrsqrt.pop %v946
      %v963 = vrsqrt.pop %v947
      %v964 = vrsqrt.pop %v948
      %v965 = vrsqrt.pop %v949
      %v966 = vrsqrt.pop %v950
      %v967 = vrsqrt.pop %v951
      %v968 = vrsqrt.pop %v952
      %v969 = vrsqrt.pop %v953
      %v970 = vrsqrt.pop %v954
      %v971 = vrsqrt.pop %v955
      %v972 = vrsqrt.pop %v956
      %v973 = vrsqrt.pop %v957
      %v974 = vmul.f32 %v862, %v958
      %v975 = vmul.f32 %v863, %v959
      %v976 = vmul.f32 %v864, %v960
      %v977 = vmul.f32 %v865, %v961
      %v978 = vmul.f32 %v866, %v962
      %v979 = vmul.f32 %v867, %v963
      %v980 = vmul.f32 %v868, %v964
      %v981 = vmul.f32 %v869, %v965
      %v982 = vmul.f32 %v870, %v966
      %v983 = vmul.f32 %v871, %v967
      %v984 = vmul.f32 %v872, %v968
      %v985 = vmul.f32 %v873, %v969
      %v986 = vmul.f32 %v874, %v970
      %v987 = vmul.f32 %v875, %v971
      %v988 = vmul.f32 %v876, %v972
      %v989 = vmul.f32 %v877, %v973
      %v990 = vld [vmem:[%s9] sm:$0x1]
      %v992 = vlaneseq
      %v993 = vshrl.u32 %v992, 7
      %v994 = vsub.s32 0, %v993
      %v995 = vrot.slane %v990, %v994
      %v997 = vmul.f32 %v974, %v995
      %v998 = vmul.f32 %v975, %v995
      %v999 = vmul.f32 %v976, %v995
      %v1000 = vmul.f32 %v977, %v995
      %v1001 = vmul.f32 %v978, %v995
      %v1002 = vmul.f32 %v979, %v995
      %v1003 = vmul.f32 %v980, %v995
      %v1004 = vmul.f32 %v981, %v995
      %v1005 = vmul.f32 %v982, %v995
      %v1006 = vmul.f32 %v983, %v995
      %v1007 = vmul.f32 %v984, %v995
      %v1008 = vmul.f32 %v985, %v995
      %v1009 = vmul.f32 %v986, %v995
      %v1010 = vmul.f32 %v987, %v995
      %v1011 = vmul.f32 %v988, %v995
      %v1012 = vmul.f32 %v989, %v995
      %v1013 = vld [vmem:[%s10] sm:$0x1]
      %v1015 = vlaneseq
      %v1016 = vshrl.u32 %v1015, 7
      %v1017 = vsub.s32 0, %v1016
      %v1018 = vrot.slane %v1013, %v1017
      %v1020 = vadd.f32 %v997, %v1018
      %v1021 = vadd.f32 %v998, %v1018
      %v1022 = vadd.f32 %v999, %v1018
      %v1023 = vadd.f32 %v1000, %v1018
      %v1024 = vadd.f32 %v1001, %v1018
      %v1025 = vadd.f32 %v1002, %v1018
      %v1026 = vadd.f32 %v1003, %v1018
      %v1027 = vadd.f32 %v1004, %v1018
      %v1028 = vadd.f32 %v1005, %v1018
      %v1029 = vadd.f32 %v1006, %v1018
      %v1030 = vadd.f32 %v1007, %v1018
      %v1031 = vadd.f32 %v1008, %v1018
      %v1032 = vadd.f32 %v1009, %v1018
      %v1033 = vadd.f32 %v1010, %v1018
      %v1034 = vadd.f32 %v1011, %v1018
      %v1035 = vadd.f32 %v1012, %v1018
      %v1036 = vld [vmem:[%s511] sm:$0xff]
      %v1037 = vcombine.high %v1036, %v1036
      %v1039 = vunpack.c.l.s4 1966171168
      %v1040 = vunpack.c.0.s8 %v1039
      %v1041 = vlaneseq
      %v1042 = vshrl.u32 %v1041, 7
      %v1043 = vsub.s32 %v1040, %v1042
      %v1044 = vrot.slane %v1036, %v1043
      %v1046 = vunpack.c.l.s4 1966171168
      %v1047 = vunpack.c.0.s8 %v1046
      %v1048 = vlaneseq
      %v1049 = vshrl.u32 %v1048, 7
      %v1050 = vsub.s32 %v1047, %v1049
      %v1051 = vrot.slane %v1037, %v1050
      %v1052 = vcombine.high %v1044, %v1044
      %v1053 = vcombine.high %v1051, %v1051
      %v1055 = vunpack.c.l.s4 1966171168
      %v1056 = vunpack.c.0.s8 %v1055
      %v1057 = vlaneseq
      %v1058 = vshrl.u32 %v1057, 7
      %v1059 = vsub.s32 %v1056, %v1058
      %v1060 = vrot.slane %v1044, %v1059
      %v1062 = vunpack.c.l.s4 1966171168
      %v1063 = vunpack.c.0.s8 %v1062
      %v1064 = vlaneseq
      %v1065 = vshrl.u32 %v1064, 7
      %v1066 = vsub.s32 %v1063, %v1065
      %v1067 = vrot.slane %v1051, %v1066
      %v1069 = vunpack.c.l.s4 1966171168
      %v1070 = vunpack.c.0.s8 %v1069
      %v1071 = vlaneseq
      %v1072 = vshrl.u32 %v1071, 7
      %v1073 = vsub.s32 %v1070, %v1072
      %v1074 = vrot.slane %v1052, %v1073
      %v1076 = vunpack.c.l.s4 1966171168
      %v1077 = vunpack.c.0.s8 %v1076
      %v1078 = vlaneseq
      %v1079 = vshrl.u32 %v1078, 7
      %v1080 = vsub.s32 %v1077, %v1079
      %v1081 = vrot.slane %v1053, %v1080
      %v1082 = vcombine.high %v1060, %v1060
      %v1083 = vcombine.high %v1067, %v1067
      %v1084 = vcombine.high %v1074, %v1074
      %v1085 = vcombine.high %v1081, %v1081
      %v1086 = vld [vmem:[%s515] sm:$0xff]
      %v1087 = vcombine.high %v1086, %v1086
      %v1089 = vunpack.c.l.s4 1966171168
      %v1090 = vunpack.c.0.s8 %v1089
      %v1091 = vlaneseq
      %v1092 = vshrl.u32 %v1091, 7
      %v1093 = vsub.s32 %v1090, %v1092
      %v1094 = vrot.slane %v1086, %v1093
      %v1096 = vunpack.c.l.s4 1966171168
      %v1097 = vunpack.c.0.s8 %v1096
      %v1098 = vlaneseq
      %v1099 = vshrl.u32 %v1098, 7
      %v1100 = vsub.s32 %v1097, %v1099
      %v1101 = vrot.slane %v1087, %v1100
      %v1102 = vcombine.high %v1094, %v1094
      %v1103 = vcombine.high %v1101, %v1101
      %v1105 = vunpack.c.l.s4 1966171168
      %v1106 = vunpack.c.0.s8 %v1105
      %v1107 = vlaneseq
      %v1108 = vshrl.u32 %v1107, 7
      %v1109 = vsub.s32 %v1106, %v1108
      %v1110 = vrot.slane %v1094, %v1109
      %v1112 = vunpack.c.l.s4 1966171168
      %v1113 = vunpack.c.0.s8 %v1112
      %v1114 = vlaneseq
      %v1115 = vshrl.u32 %v1114, 7
      %v1116 = vsub.s32 %v1113, %v1115
      %v1117 = vrot.slane %v1101, %v1116
      %v1119 = vunpack.c.l.s4 1966171168
      %v1120 = vunpack.c.0.s8 %v1119
      %v1121 = vlaneseq
      %v1122 = vshrl.u32 %v1121, 7
      %v1123 = vsub.s32 %v1120, %v1122
      %v1124 = vrot.slane %v1102, %v1123
      %v1126 = vunpack.c.l.s4 1966171168
      %v1127 = vunpack.c.0.s8 %v1126
      %v1128 = vlaneseq
      %v1129 = vshrl.u32 %v1128, 7
      %v1130 = vsub.s32 %v1127, %v1129
      %v1131 = vrot.slane %v1103, %v1130
      %v1132 = vcombine.high %v1110, %v1110
      %v1133 = vcombine.high %v1117, %v1117
      %v1134 = vcombine.high %v1124, %v1124
      %v1135 = vcombine.high %v1131, %v1131
      %v1136 = vlaneseq
      %v1137 = vshrl.u32 %v1136, 7
      %v1138 = vsub.s32 0, %v1137
      %v1139 = vrot.slane %v1060, %v1138
      %v1140 = vlaneseq
      %v1141 = vshrl.u32 %v1140, 7
      %v1142 = vsub.s32 0, %v1141
      %v1143 = vrot.slane %v1074, %v1142
      %v1144 = vlaneseq
      %v1145 = vshrl.u32 %v1144, 7
      %v1146 = vsub.s32 0, %v1145
      %v1147 = vrot.slane %v1082, %v1146
      %v1148 = vlaneseq
      %v1149 = vshrl.u32 %v1148, 7
      %v1150 = vsub.s32 0, %v1149
      %v1151 = vrot.slane %v1084, %v1150
      %v1152 = vlaneseq
      %v1153 = vshrl.u32 %v1152, 7
      %v1154 = vsub.s32 0, %v1153
      %v1155 = vrot.slane %v1067, %v1154
      %v1156 = vlaneseq
      %v1157 = vshrl.u32 %v1156, 7
      %v1158 = vsub.s32 0, %v1157
      %v1159 = vrot.slane %v1081, %v1158
      %v1160 = vlaneseq
      %v1161 = vshrl.u32 %v1160, 7
      %v1162 = vsub.s32 0, %v1161
      %v1163 = vrot.slane %v1083, %v1162
      %v1164 = vlaneseq
      %v1165 = vshrl.u32 %v1164, 7
      %v1166 = vsub.s32 0, %v1165
      %v1167 = vrot.slane %v1085, %v1166
      %vm1168 = vcmp.ge.s32.totalorder %v641, %v1139
      %vm1169 = vcmp.ge.s32.totalorder %v642, %v1139
      %vm1170 = vcmp.ge.s32.totalorder %v641, %v1143
      %vm1171 = vcmp.ge.s32.totalorder %v642, %v1143
      %vm1172 = vcmp.ge.s32.totalorder %v641, %v1147
      %vm1173 = vcmp.ge.s32.totalorder %v642, %v1147
      %vm1174 = vcmp.ge.s32.totalorder %v641, %v1151
      %vm1175 = vcmp.ge.s32.totalorder %v642, %v1151
      %vm1176 = vcmp.ge.s32.totalorder %v641, %v1155
      %vm1177 = vcmp.ge.s32.totalorder %v642, %v1155
      %vm1178 = vcmp.ge.s32.totalorder %v641, %v1159
      %vm1179 = vcmp.ge.s32.totalorder %v642, %v1159
      %vm1180 = vcmp.ge.s32.totalorder %v641, %v1163
      %vm1181 = vcmp.ge.s32.totalorder %v642, %v1163
      %vm1182 = vcmp.ge.s32.totalorder %v641, %v1167
      %vm1183 = vcmp.ge.s32.totalorder %v642, %v1167
      %v1184 = vlaneseq
      %v1185 = vshrl.u32 %v1184, 7
      %v1186 = vsub.s32 0, %v1185
      %v1187 = vrot.slane %v1110, %v1186
      %v1188 = vlaneseq
      %v1189 = vshrl.u32 %v1188, 7
      %v1190 = vsub.s32 0, %v1189
      %v1191 = vrot.slane %v1124, %v1190
      %v1192 = vlaneseq
      %v1193 = vshrl.u32 %v1192, 7
      %v1194 = vsub.s32 0, %v1193
      %v1195 = vrot.slane %v1132, %v1194
      %v1196 = vlaneseq
      %v1197 = vshrl.u32 %v1196, 7
      %v1198 = vsub.s32 0, %v1197
      %v1199 = vrot.slane %v1134, %v1198
      %v1200 = vlaneseq
      %v1201 = vshrl.u32 %v1200, 7
      %v1202 = vsub.s32 0, %v1201
      %v1203 = vrot.slane %v1117, %v1202
      %v1204 = vlaneseq
      %v1205 = vshrl.u32 %v1204, 7
      %v1206 = vsub.s32 0, %v1205
      %v1207 = vrot.slane %v1131, %v1206
      %v1208 = vlaneseq
      %v1209 = vshrl.u32 %v1208, 7
      %v1210 = vsub.s32 0, %v1209
      %v1211 = vrot.slane %v1133, %v1210
      %v1212 = vlaneseq
      %v1213 = vshrl.u32 %v1212, 7
      %v1214 = vsub.s32 0, %v1213
      %v1215 = vrot.slane %v1135, %v1214
      %vm1216 = vcmp.lt.s32.totalorder %v641, %v1187
      %vm1217 = vcmp.lt.s32.totalorder %v642, %v1187
      %vm1218 = vcmp.lt.s32.totalorder %v641, %v1191
      %vm1219 = vcmp.lt.s32.totalorder %v642, %v1191
      %vm1220 = vcmp.lt.s32.totalorder %v641, %v1195
      %vm1221 = vcmp.lt.s32.totalorder %v642, %v1195
      %vm1222 = vcmp.lt.s32.totalorder %v641, %v1199
      %vm1223 = vcmp.lt.s32.totalorder %v642, %v1199
      %vm1224 = vcmp.lt.s32.totalorder %v641, %v1203
      %vm1225 = vcmp.lt.s32.totalorder %v642, %v1203
      %vm1226 = vcmp.lt.s32.totalorder %v641, %v1207
      %vm1227 = vcmp.lt.s32.totalorder %v642, %v1207
      %vm1228 = vcmp.lt.s32.totalorder %v641, %v1211
      %vm1229 = vcmp.lt.s32.totalorder %v642, %v1211
      %vm1230 = vcmp.lt.s32.totalorder %v641, %v1215
      %vm1231 = vcmp.lt.s32.totalorder %v642, %v1215
      %vm1232 = vmand %vm1168, %vm1216
      %vm1233 = vmand %vm1169, %vm1217
      %vm1234 = vmand %vm1170, %vm1218
      %vm1235 = vmand %vm1171, %vm1219
      %vm1236 = vmand %vm1172, %vm1220
      %vm1237 = vmand %vm1173, %vm1221
      %vm1238 = vmand %vm1174, %vm1222
      %vm1239 = vmand %vm1175, %vm1223
      %vm1240 = vmand %vm1176, %vm1224
      %vm1241 = vmand %vm1177, %vm1225
      %vm1242 = vmand %vm1178, %vm1226
      %vm1243 = vmand %vm1179, %vm1227
      %vm1244 = vmand %vm1180, %vm1228
      %vm1245 = vmand %vm1181, %vm1229
      %vm1246 = vmand %vm1182, %vm1230
      %vm1247 = vmand %vm1183, %vm1231
      %v1248 = vsel %vm1232, 1, 0
      %v1249 = vsel %vm1233, 1, 0
      %v1250 = vsel %vm1234, 1, 0
      %v1251 = vsel %vm1235, 1, 0
      %v1252 = vsel %vm1236, 1, 0
      %v1253 = vsel %vm1237, 1, 0
      %v1254 = vsel %vm1238, 1, 0
      %v1255 = vsel %vm1239, 1, 0
      %v1256 = vsel %vm1240, 1, 0
      %v1257 = vsel %vm1241, 1, 0
      %v1258 = vsel %vm1242, 1, 0
      %v1259 = vsel %vm1243, 1, 0
      %v1260 = vsel %vm1244, 1, 0
      %v1261 = vsel %vm1245, 1, 0
      %v1262 = vsel %vm1246, 1, 0
      %v1263 = vsel %vm1247, 1, 0
      %v1264 = vcvt.s32.f32 %v1248
      %v1265 = vcvt.s32.f32 %v1249
      %v1266 = vcvt.s32.f32 %v1250
      %v1267 = vcvt.s32.f32 %v1251
      %v1268 = vcvt.s32.f32 %v1252
      %v1269 = vcvt.s32.f32 %v1253
      %v1270 = vcvt.s32.f32 %v1254
      %v1271 = vcvt.s32.f32 %v1255
      %v1272 = vcvt.s32.f32 %v1256
      %v1273 = vcvt.s32.f32 %v1257
      %v1274 = vcvt.s32.f32 %v1258
      %v1275 = vcvt.s32.f32 %v1259
      %v1276 = vcvt.s32.f32 %v1260
      %v1277 = vcvt.s32.f32 %v1261
      %v1278 = vcvt.s32.f32 %v1262
      %v1279 = vcvt.s32.f32 %v1263
      %1281 = vset.pattern.permute.xlu0 0
      %1282 = vperm.xlu0 %1281, %v1264
      %v1283 = vpop.permute.xlu0 %1282
      %1286 = vset.pattern.permute.xlu0 0
      %1287 = vperm.xlu0 %1286, %v1265
      %v1288 = vpop.permute.xlu0 %1287
      %1291 = vset.pattern.permute.xlu0 0
      %1292 = vperm.xlu0 %1291, %v1266
      %v1293 = vpop.permute.xlu0 %1292
      %1296 = vset.pattern.permute.xlu0 0
      %1297 = vperm.xlu0 %1296, %v1267
      %v1298 = vpop.permute.xlu0 %1297
      %1301 = vset.pattern.permute.xlu0 0
      %1302 = vperm.xlu0 %1301, %v1268
      %v1303 = vpop.permute.xlu0 %1302
      %1306 = vset.pattern.permute.xlu0 0
      %1307 = vperm.xlu0 %1306, %v1269
      %v1308 = vpop.permute.xlu0 %1307
      %1311 = vset.pattern.permute.xlu0 0
      %1312 = vperm.xlu0 %1311, %v1270
      %v1313 = vpop.permute.xlu0 %1312
      %1316 = vset.pattern.permute.xlu0 0
      %1317 = vperm.xlu0 %1316, %v1271
      %v1318 = vpop.permute.xlu0 %1317
      %1321 = vset.pattern.permute.xlu0 0
      %1322 = vperm.xlu0 %1321, %v1272
      %v1323 = vpop.permute.xlu0 %1322
      %1326 = vset.pattern.permute.xlu0 0
      %1327 = vperm.xlu0 %1326, %v1273
      %v1328 = vpop.permute.xlu0 %1327
      %1331 = vset.pattern.permute.xlu0 0
      %1332 = vperm.xlu0 %1331, %v1274
      %v1333 = vpop.permute.xlu0 %1332
      %1336 = vset.pattern.permute.xlu0 0
      %1337 = vperm.xlu0 %1336, %v1275
      %v1338 = vpop.permute.xlu0 %1337
      %1341 = vset.pattern.permute.xlu0 0
      %1342 = vperm.xlu0 %1341, %v1276
      %v1343 = vpop.permute.xlu0 %1342
      %1346 = vset.pattern.permute.xlu0 0
      %1347 = vperm.xlu0 %1346, %v1277
      %v1348 = vpop.permute.xlu0 %1347
      %1351 = vset.pattern.permute.xlu0 0
      %1352 = vperm.xlu0 %1351, %v1278
      %v1353 = vpop.permute.xlu0 %1352
      %1356 = vset.pattern.permute.xlu0 0
      %1357 = vperm.xlu0 %1356, %v1279
      %v1358 = vpop.permute.xlu0 %1357
      %v1360 = vmul.f32 %v1020, %v1283
      %v1361 = vmul.f32 %v1021, %v1288
      %v1362 = vmul.f32 %v1022, %v1293
      %v1363 = vmul.f32 %v1023, %v1298
      %v1364 = vmul.f32 %v1024, %v1303
      %v1365 = vmul.f32 %v1025, %v1308
      %v1366 = vmul.f32 %v1026, %v1313
      %v1367 = vmul.f32 %v1027, %v1318
      %v1368 = vmul.f32 %v1028, %v1323
      %v1369 = vmul.f32 %v1029, %v1328
      %v1370 = vmul.f32 %v1030, %v1333
      %v1371 = vmul.f32 %v1031, %v1338
      %v1372 = vmul.f32 %v1032, %v1343
      %v1373 = vmul.f32 %v1033, %v1348
      %v1374 = vmul.f32 %v1034, %v1353
      %v1375 = vmul.f32 %v1035, %v1358
      %v1376 = vadd.f32 %v1360, %v1361
      %v1377 = vrot.slane %v1376, 4
      %v1378 = vadd.f32 %v1376, %v1377
      %v1379 = vrot.slane %v1378, 2
      %v1380 = vadd.f32 %v1378, %v1379
      %v1381 = vrot.slane %v1380, 1
      %v1382 = vadd.f32 %v1380, %v1381
      %v1383 = vadd.f32 %v1362, %v1363
      %v1384 = vrot.slane %v1383, 4
      %v1385 = vadd.f32 %v1383, %v1384
      %v1386 = vrot.slane %v1385, 2
      %v1387 = vadd.f32 %v1385, %v1386
      %v1388 = vrot.slane %v1387, 1
      %v1389 = vadd.f32 %v1387, %v1388
      %v1390 = vadd.f32 %v1364, %v1365
      %v1391 = vrot.slane %v1390, 4
      %v1392 = vadd.f32 %v1390, %v1391
      %v1393 = vrot.slane %v1392, 2
      %v1394 = vadd.f32 %v1392, %v1393
      %v1395 = vrot.slane %v1394, 1
      %v1396 = vadd.f32 %v1394, %v1395
      %v1397 = vadd.f32 %v1366, %v1367
      %v1398 = vrot.slane %v1397, 4
      %v1399 = vadd.f32 %v1397, %v1398
      %v1400 = vrot.slane %v1399, 2
      %v1401 = vadd.f32 %v1399, %v1400
      %v1402 = vrot.slane %v1401, 1
      %v1403 = vadd.f32 %v1401, %v1402
      %v1404 = vadd.f32 %v1368, %v1369
      %v1405 = vrot.slane %v1404, 4
      %v1406 = vadd.f32 %v1404, %v1405
      %v1407 = vrot.slane %v1406, 2
      %v1408 = vadd.f32 %v1406, %v1407
      %v1409 = vrot.slane %v1408, 1
      %v1410 = vadd.f32 %v1408, %v1409
      %v1411 = vadd.f32 %v1370, %v1371
      %v1412 = vrot.slane %v1411, 4
      %v1413 = vadd.f32 %v1411, %v1412
      %v1414 = vrot.slane %v1413, 2
      %v1415 = vadd.f32 %v1413, %v1414
      %v1416 = vrot.slane %v1415, 1
      %v1417 = vadd.f32 %v1415, %v1416
      %v1418 = vadd.f32 %v1372, %v1373
      %v1419 = vrot.slane %v1418, 4
      %v1420 = vadd.f32 %v1418, %v1419
      %v1421 = vrot.slane %v1420, 2
      %v1422 = vadd.f32 %v1420, %v1421
      %v1423 = vrot.slane %v1422, 1
      %v1424 = vadd.f32 %v1422, %v1423
      %v1425 = vadd.f32 %v1374, %v1375
      %v1426 = vrot.slane %v1425, 4
      %v1427 = vadd.f32 %v1425, %v1426
      %v1428 = vrot.slane %v1427, 2
      %v1429 = vadd.f32 %v1427, %v1428
      %v1430 = vrot.slane %v1429, 1
      %v1431 = vadd.f32 %v1429, %v1430
      %v1432 = vsub.s32 %v1086, %v1036
      %v1433 = vcvt.s32.f32 %v1432
      %v1434 = vmax.f32 %v1433, 1e-09
      %v1435 = vrcp.pop %v1434
      %1437 = vset.pattern.permute.xlu0 0
      %1438 = vperm.xlu0 %1437, %v1435
      %v1439 = vpop.permute.xlu0 %1438
      %v1440 = vrot.slane %v1439, 1
      %v1441 = vrot.slane %v1439, 2
      %v1442 = vrot.slane %v1439, 3
      %v1443 = vrot.slane %v1439, 4
      %v1444 = vrot.slane %v1439, 5
      %v1445 = vrot.slane %v1439, 6
      %v1446 = vrot.slane %v1439, 7
      %v1455 = vmul.f32 %v1382, %v1439
      %v1456 = vmul.f32 %v1389, %v1440
      %v1457 = vmul.f32 %v1396, %v1441
      %v1458 = vmul.f32 %v1403, %v1442
      %v1459 = vmul.f32 %v1410, %v1443
      %v1460 = vmul.f32 %v1417, %v1444
      %v1461 = vmul.f32 %v1424, %v1445
      %v1462 = vmul.f32 %v1431, %v1446
      %v1463 = vmul.f32 %v1455, %v1455
      %v1464 = vmul.f32 %v1456, %v1456
      %v1465 = vmul.f32 %v1457, %v1457
      %v1466 = vmul.f32 %v1458, %v1458
      %v1467 = vmul.f32 %v1459, %v1459
      %v1468 = vmul.f32 %v1460, %v1460
      %v1469 = vmul.f32 %v1461, %v1461
      %v1470 = vmul.f32 %v1462, %v1462
      %v1479 = vrot.slane %v1464, 7
      %vm1480 = vcmask 1041409
      %v1481 = vsel %vm1480, %v1479, %v1463
      %v1482 = vrot.slane %v1465, 6
      %vm1483 = vcmask 1042434
      %v1484 = vsel %vm1483, %v1482, %v1481
      %v1485 = vrot.slane %v1466, 5
      %vm1486 = vcmask 1043459
      %v1487 = vsel %vm1486, %v1485, %v1484
      %v1488 = vrot.slane %v1467, 4
      %vm1489 = vcmask 1044484
      %v1490 = vsel %vm1489, %v1488, %v1487
      %v1491 = vrot.slane %v1468, 3
      %vm1492 = vcmask 1045509
      %v1493 = vsel %vm1492, %v1491, %v1490
      %v1494 = vrot.slane %v1469, 2
      %vm1495 = vcmask 1046534
      %v1496 = vsel %vm1495, %v1494, %v1493
      %v1497 = vrot.slane %v1470, 1
      %vm1498 = vcmask 1047559
      %v1499 = vsel %vm1498, %v1497, %v1496
      %1501 = vadd.xlane.f32.xlu0 %v1499
      %v1502 = vpop.xlane.xlu0 %1501
      %v1503 = vmax.f32 %v1502, 1e-12
      %v1504 = vrsqrt.pop %v1503
      %v1506 = vrot.slane %v1504, 1
      %v1507 = vrot.slane %v1504, 2
      %v1508 = vrot.slane %v1504, 3
      %v1509 = vrot.slane %v1504, 4
      %v1510 = vrot.slane %v1504, 5
      %v1511 = vrot.slane %v1504, 6
      %v1512 = vrot.slane %v1504, 7
      %v1521 = vmul.f32 %v1455, %v1504
      %v1522 = vmul.f32 %v1456, %v1506
      %v1523 = vmul.f32 %v1457, %v1507
      %v1524 = vmul.f32 %v1458, %v1508
      %v1525 = vmul.f32 %v1459, %v1509
      %v1526 = vmul.f32 %v1460, %v1510
      %v1527 = vmul.f32 %v1461, %v1511
      %v1528 = vmul.f32 %v1462, %v1512
      %v1529 = vpack.c.bf16 %v1521, %v1521
      %v1530 = vpack.c.bf16 %v1522, %v1522
      %v1531 = vpack.c.bf16 %v1523, %v1523
      %v1532 = vpack.c.bf16 %v1524, %v1524
      %v1533 = vpack.c.bf16 %v1525, %v1525
      %v1534 = vpack.c.bf16 %v1526, %v1526
      %v1535 = vpack.c.bf16 %v1527, %v1527
      %v1536 = vpack.c.bf16 %v1528, %v1528
      %v1537 = vld [vmem:[%s11] sm:$0xf]
      %v1538 = vld [vmem:[%s11 + $0x4] sm:$0xf]
      %v1539 = vld [vmem:[%s11 + $0x8] sm:$0xf]
      %v1540 = vld [vmem:[%s11 + $0xc] sm:$0xf]
      %v1541 = vld [vmem:[%s11 + $0x10] sm:$0xf]
      %v1542 = vld [vmem:[%s11 + $0x14] sm:$0xf]
      %v1543 = vld [vmem:[%s11 + $0x18] sm:$0xf]
      %v1544 = vld [vmem:[%s11 + $0x1c] sm:$0xf]
      %v1545 = vld [vmem:[%s11 + $0x20] sm:$0xf]
      %v1546 = vld [vmem:[%s11 + $0x24] sm:$0xf]
      %v1547 = vld [vmem:[%s11 + $0x28] sm:$0xf]
      %v1548 = vld [vmem:[%s11 + $0x2c] sm:$0xf]
      %v1549 = vld [vmem:[%s11 + $0x30] sm:$0xf]
      %v1550 = vld [vmem:[%s11 + $0x34] sm:$0xf]
      %v1551 = vld [vmem:[%s11 + $0x38] sm:$0xf]
      %v1552 = vld [vmem:[%s11 + $0x3c] sm:$0xf]
      %v1553 = vld [vmem:[%s12] sm:$0x1]
      %v1555 = vlaneseq
      %v1556 = vshrl.u32 %v1555, 7
      %v1557 = vsub.s32 0, %v1556
      %v1558 = vrot.slane %v1553, %v1557
      %v1568 = vunpack.c.l.b16 %v1529
      %v1569 = vunpack.c.l.b16 %v1530
      %v1570 = vunpack.c.l.b16 %v1531
      %v1571 = vunpack.c.l.b16 %v1532
      %v1572 = vunpack.c.l.b16 %v1533
      %v1573 = vunpack.c.l.b16 %v1534
      %v1574 = vunpack.c.l.b16 %v1535
      %v1575 = vunpack.c.l.b16 %v1536
      %v1576 = vrot.slane %v1569, 7
      %v1577 = vsel %vm1480, %v1576, %v1568
      %v1578 = vrot.slane %v1570, 6
      %v1579 = vsel %vm1483, %v1578, %v1577
      %v1580 = vrot.slane %v1571, 5
      %v1581 = vsel %vm1486, %v1580, %v1579
      %v1582 = vrot.slane %v1572, 4
      %v1583 = vsel %vm1489, %v1582, %v1581
      %v1584 = vrot.slane %v1573, 3
      %v1585 = vsel %vm1492, %v1584, %v1583
      %v1586 = vrot.slane %v1574, 2
      %v1587 = vsel %vm1495, %v1586, %v1585
      %v1588 = vrot.slane %v1575, 1
      %v1589 = vsel %vm1498, %v1588, %v1587
      %v1590 = vpack.c.b16 %v1589, %v1589
      %v1608 = vunpack.c.l.b16 %v1537
      %v1609 = vunpack.c.l.b16 %v1538
      %v1610 = vunpack.c.l.b16 %v1539
      %v1611 = vunpack.c.l.b16 %v1540
      %v1612 = vunpack.c.l.b16 %v1541
      %v1613 = vunpack.c.l.b16 %v1542
      %v1614 = vunpack.c.l.b16 %v1543
      %v1615 = vunpack.c.l.b16 %v1544
      %v1616 = vunpack.c.l.b16 %v1545
      %v1617 = vunpack.c.l.b16 %v1546
      %v1618 = vunpack.c.l.b16 %v1547
      %v1619 = vunpack.c.l.b16 %v1548
      %v1620 = vunpack.c.l.b16 %v1549
      %v1621 = vunpack.c.l.b16 %v1550
      %v1622 = vunpack.c.l.b16 %v1551
      %v1623 = vunpack.c.l.b16 %v1552
      %v1624 = vpack.c.b16 %v1609, %v1608
      %v1625 = vpack.c.b16 %v1611, %v1610
      %v1626 = vpack.c.b16 %v1613, %v1612
      %v1627 = vpack.c.b16 %v1615, %v1614
      %v1628 = vpack.c.b16 %v1617, %v1616
      %v1629 = vpack.c.b16 %v1619, %v1618
      %v1630 = vpack.c.b16 %v1621, %v1620
      %v1631 = vpack.c.b16 %v1623, %v1622
      %1640 = vmatprep.subr.bf16.mxu0 0
      %1641 = vmatpush1.bf16.msra.mxu0 %v1624
      %1642 = vmatprep.subr.bf16.mxu0 0
      %1643 = vmatpush1.bf16.msra.mxu0 %v1625
      %1644 = vmatprep.subr.bf16.mxu0 0
      %1645 = vmatpush1.bf16.msra.mxu0 %v1626
      %1646 = vmatprep.subr.bf16.mxu0 0
      %1647 = vmatpush1.bf16.msra.mxu0 %v1627
      %1648 = vmatprep.subr.bf16.mxu0 0
      %1649 = vmatpush1.bf16.msra.mxu0 %v1628
      %1650 = vmatprep.subr.bf16.mxu0 0
      %1651 = vmatpush1.bf16.msra.mxu0 %v1629
      %1652 = vmatprep.subr.bf16.mxu0 0
      %1653 = vmatpush1.bf16.msra.mxu0 %v1630
      %1654 = vmatprep.subr.bf16.mxu0 0
      %1655 = vmatpush1.bf16.msra.mxu0 %v1631
      %1656 = vmatprep.subr.bf16.mxu0 0
      %1657 = vmatpush1.bf16.msra.mxu0 0
      %1658 = vmatprep.subr.bf16.mxu0 0
      %1659 = vmatpush1.bf16.msra.mxu0 0
      %1660 = vmatprep.subr.bf16.mxu0 0
      %1661 = vmatpush1.bf16.msra.mxu0 0
      %1662 = vmatprep.subr.bf16.mxu0 0
      %1663 = vmatpush1.bf16.msra.mxu0 0
      %1664 = vmatprep.subr.bf16.mxu0 0
      %1665 = vmatpush1.bf16.msra.mxu0 0
      %1666 = vmatprep.subr.bf16.mxu0 0
      %1667 = vmatpush1.bf16.msra.mxu0 0
      %1668 = vmatprep.subr.bf16.mxu0 0
      %1669 = vmatpush1.bf16.msra.mxu0 0
      %1670 = vmatprep.subr.bf16.mxu0 0
      %1671 = vmatpush1.bf16.msra.mxu0 0
      %1672 = vmatprep.mubr.bf16.mxu0 0
      %1673 = vmatmul.mubr.bf16.gmra.mrb[0].mxu0 %v1590
      %v1674 = vpop.f32.mrb[0].mxu0
      %v1675 = vadd.f32 %v1558, %v1674
      %v1676 = vpop.f32.mrb[0].mxu0
      %v1677 = vpop.f32.mrb[0].mxu0
      %v1678 = vpop.f32.mrb[0].mxu0
      %1679 = vdwg.mxu0
      %1680 = vst [vmem:[%s519] sm:$0xff] %v1675
      %p1681 = scmp.lt.s32.totalorder %s24, 1
      %s1682 = scalar_select %p1681, %s24, 1
      %s1683 = smul.addr %s1682, 8
      %s1684 = scalar_lea.vmem %s13, %s1683
      // Predicated region
      $region73: #{nlq_model5_forward.1} parent=71 // pred_check
        %p1685 = pneg %p335
      $region74: #{nlq_model5_forward.1} parent=71 // pred_check_branch
        %1687 = sbr.rel (%p1685) target = $region76
      $region75: #{nlq_model5_forward.1} parent=71 // pred_region
        _
      $region76: #{nlq_model5_forward.1} parent=71 // pred_fallthru
        _
    $region72: #{nlq_model5_forward.1} parent=5 // pred_fallthru
      _
    %p1688 = scmp.le.s32.totalorder 2, %s19
    // Predicated region
    $region77: #{nlq_model5_forward.1} parent=5 // pred_check
      %p1689 = pneg %p1688
    $region78: #{nlq_model5_forward.1} parent=5 // pred_check_branch
      %1691 = sbr.rel (%p1689) target = $region80
    $region79: #{nlq_model5_forward.1} parent=5 // pred_region
      %s1692 = ssub.s32 %s19, 2
      // Predicated region
      $region81: #{nlq_model5_forward.1} parent=79 // pred_check
        %p1693 = pneg %p341
      $region82: #{nlq_model5_forward.1} parent=79 // pred_check_branch
        %1695 = sbr.rel (%p1693) target = $region84
      $region83: #{nlq_model5_forward.1} parent=79 // pred_region
        %p1696 = scmp.lt.s32.totalorder %s25, 1
        %s1697 = scalar_select %p1696, %s25, 1
        %s1698 = smul.addr %s1697, 8
        %s1699 = scalar_lea.vmem %s13, %s1698
      $region84: #{nlq_model5_forward.1} parent=79 // pred_fallthru
        _
    $region80: #{nlq_model5_forward.1} parent=5 // pred_fallthru
      _
  $region6: #{nlq_model5_forward.1} parent=0 // loop_footer
    %s23 = sadd.s32 1, %s19
  $region7: #{nlq_model5_forward.1} parent=0 // loop_footer_branch
    %18 = sbr.rel target = $region3
  $region8: #{nlq_model5_forward.1} parent=0 // loop_exit
    _

</llo_original>
